<compile_context>
chip_gen: v7x
topology: tpu7x:2x2x1
jax: 0.10.0
libtpu: 0.0.40
codegen_flags: <defaults>
</compile_context>

<pallas_src>
import functools

import jax
import jax.numpy as jnp
from jax.experimental import pallas as pl
from jax.experimental.pallas import tpu as pltpu


# ----------------------------------------------------------------------------
# tiling helpers (static, trace-time)
# ----------------------------------------------------------------------------
def _pick_tile_ho(Ho, Wo, max_rows=2048):
    """Largest divisor of Ho whose tile has <= max_rows output pixels; prefer >=2 tiles."""
    best = 1
    for d in range(1, Ho + 1):
        if Ho % d == 0 and d * Wo <= max_rows:
            best = d
    if best == Ho and Ho > 1:
        for d in range(Ho // 2, 0, -1):
            if Ho % d == 0 and d * Wo <= max_rows:
                return d
    return best


def _pick_row_tile(R, target=2048):
    """Largest multiple-of-8 divisor of R that is <= target; prefer >= 2 tiles."""
    best = None
    upper = min(R, target)
    for t in range(8, upper + 1, 8):
        if R % t == 0:
            best = t
    if best is None:
        return R
    if best == R and R > 8:
        for t in range(R // 2, 7, -1):
            if t % 8 == 0 and R % t == 0:
                return t
    return best


# ----------------------------------------------------------------------------
# Kernel 1: 3x3 conv as a single im2col matmul (K = 9*Cin) + BN1 partial stats
# ----------------------------------------------------------------------------
def _conv3x3_stats_kernel(xp_ref, w_ref, y_ref, stat_ref, *,
                          stride, tile_ho, Wo, cin):
    # xp_ref  : (Hp, Wp, Cin)  whole padded image of one batch element
    #           (same block is revisited across row tiles -> DMA'd once per n)
    # w_ref   : (9*Cin, hidden) im2col-reshaped weights
    # y_ref   : (tile_ho, Wo, hidden)
    # stat_ref: (8, hidden)     row0 = sum, row1 = sum of squares (f32)
    h = pl.program_id(1)
    hstep = tile_ho * stride
    row0 = pl.multiple_of(h * hstep, hstep)
    tile_hp = (tile_ho - 1) * stride + 3

    xp = xp_ref[pl.ds(row0, tile_hp), :, :].astype(jnp.float32)  # (tile_hp, Wp, Cin)

    # im2col: 9 shifted taps concatenated along channels -> one K=9*Cin matmul.
    taps = []
    for dy in range(3):
        for dx in range(3):
            if stride == 1:
                taps.append(xp[dy:dy + tile_ho, dx:dx + Wo, :])
            else:
                taps.append(jax.lax.slice(
                    xp, (dy, dx, 0),
                    (dy + stride * (tile_ho - 1) + 1,
                     dx + stride * (Wo - 1) + 1, cin),
                    (stride, stride, 1)))
    patches = jnp.concatenate(taps, axis=-1)                     # (tile_ho, Wo, 9*Cin)

    hidden = y_ref.shape[-1]
    acc = jnp.dot(patches.reshape(tile_ho * Wo, 9 * cin),
                  w_ref[...].astype(jnp.float32),
                  preferred_element_type=jnp.float32)            # (tile_ho*Wo, hidden)
    y_ref[...] = acc.reshape(tile_ho, Wo, hidden).astype(y_ref.dtype)

    # fused BN1 partial statistics (f32)
    s = jnp.sum(acc, axis=0, keepdims=True)                      # (1, hidden)
    ss = jnp.sum(acc * acc, axis=0, keepdims=True)               # (1, hidden)
    stat_ref[...] = jnp.concatenate(
        [s, ss, jnp.zeros((6, hidden), jnp.float32)], axis=0)


# ----------------------------------------------------------------------------
# Kernel 2: BN1 affine + SiLU + 1x1 conv (matmul over C) + BN2 partial stats
#           (lane-dense flattened (rows, C) layout)
# ----------------------------------------------------------------------------
def _bn_silu_pw_stats_kernel(y_ref, s_ref, b_ref, w_ref, o_ref, stat_ref):
    # y_ref: (tr, hidden); s_ref/b_ref: (1, hidden); w_ref: (hidden, outp)
    # o_ref: (tr, outp);  stat_ref: (8, outp)
    z = y_ref[...].astype(jnp.float32) * s_ref[0] + b_ref[0]
    z = z * jax.nn.sigmoid(z)                                    # SiLU
    out = jnp.dot(z, w_ref[...].astype(jnp.float32),
                  preferred_element_type=jnp.float32)            # (tr, outp)
    o_ref[...] = out.astype(o_ref.dtype)

    cout = out.shape[-1]
    s = jnp.sum(out, axis=0, keepdims=True)
    ss = jnp.sum(out * out, axis=0, keepdims=True)
    stat_ref[...] = jnp.concatenate(
        [s, ss, jnp.zeros((6, cout), jnp.float32)], axis=0)


# ----------------------------------------------------------------------------
# Kernel 3: BN2 affine, optionally + residual (flattened rows)
# ----------------------------------------------------------------------------
def _bn_kernel(y_ref, s_ref, b_ref, o_ref):
    o_ref[...] = (y_ref[...].astype(jnp.float32) * s_ref[0]
                  + b_ref[0]).astype(o_ref.dtype)


def _bn_res_kernel(y_ref, s_ref, b_ref, sc_ref, o_ref):
    out = y_ref[...].astype(jnp.float32) * s_ref[0] + b_ref[0]
    out = out + sc_ref[...].astype(jnp.float32)
    o_ref[...] = out.astype(o_ref.dtype)


# ----------------------------------------------------------------------------
# Wrapper
# ----------------------------------------------------------------------------
def edge_residual_forward(x_nchw, params, *, stride):
    w_exp, gamma1, beta1, w_pwl, gamma2, beta2 = params
    eps = 1e-5
    N, Cin, Hin, Win = x_nchw.shape
    hidden = w_exp.shape[-1]
    outp = w_pwl.shape[-1]
    identity = (stride == 1 and Cin == outp)

    # Layout plumbing (XLA fuses the transpose+pad into one copy pass).
    x = jnp.transpose(x_nchw, (0, 2, 3, 1)).astype(jnp.float32)   # NCHW -> NHWC
    xp = jnp.pad(x, ((0, 0), (1, 1), (1, 1), (0, 0)))             # pad=1
    Hp, Wp = Hin + 2, Win + 2
    Ho = (Hin + 2 - 3) // stride + 1
    Wo = (Win + 2 - 3) // stride + 1

    # im2col weights: HWIO (3,3,Cin,hidden) -> (9*Cin, hidden), once.
    w_im2col = w_exp.reshape(9 * Cin, hidden).astype(jnp.float32)

    tile_ho = _pick_tile_ho(Ho, Wo)
    n_h = Ho // tile_ho

    vmem_cap = 32 * 1024 * 1024    # fits v7x's 64 MiB physical VMEM comfortably
    cparams2d = pltpu.CompilerParams(
        dimension_semantics=("parallel", "parallel"),
        vmem_limit_bytes=vmem_cap)
    cparams1d = pltpu.CompilerParams(
        dimension_semantics=("parallel",),
        vmem_limit_bytes=vmem_cap)

    # --- kernel 1: conv_exp (3x3, im2col) + fused BN1 partial stats ---------
    y1, st1 = pl.pallas_call(
        functools.partial(_conv3x3_stats_kernel,
                          stride=stride, tile_ho=tile_ho, Wo=Wo, cin=Cin),
        out_shape=(jax.ShapeDtypeStruct((N, Ho, Wo, hidden), jnp.float32),
                   jax.ShapeDtypeStruct((N * n_h, 8, hidden), jnp.float32)),
        grid=(N, n_h),
        in_specs=[
            pl.BlockSpec((None, Hp, Wp, Cin), lambda n, h: (n, 0, 0, 0)),
            pl.BlockSpec((9 * Cin, hidden), lambda n, h: (0, 0)),
        ],
        out_specs=(
            pl.BlockSpec((None, tile_ho, Wo, hidden), lambda n, h: (n, h, 0, 0)),
            pl.BlockSpec((None, 8, hidden), lambda n, h: (n * n_h + h, 0, 0)),
        ),
        compiler_params=cparams2d,
    )(xp, w_im2col)

    # --- bn1: train-mode batch statistics from fused partial sums -----------
    cnt1 = float(N * Ho * Wo)
    mean1 = jnp.sum(st1[:, 0, :], axis=0) / cnt1
    var1 = jnp.maximum(jnp.sum(st1[:, 1, :], axis=0) / cnt1 - mean1 * mean1, 0.0)
    scale1 = (gamma1 * jax.lax.rsqrt(var1 + eps)).astype(jnp.float32)
    bias1 = (beta1 - mean1 * scale1).astype(jnp.float32)

    # --- kernel 2: BN1 affine + SiLU + conv_pwl (1x1) + BN2 partial stats ---
    R = N * Ho * Wo
    y1_flat = y1.reshape(R, hidden)                 # free reshape (contiguous NHWC)
    tr = _pick_row_tile(R)
    if R % tr != 0:
        tr = R
    n_rt = R // tr

    y2_flat, st2 = pl.pallas_call(
        _bn_silu_pw_stats_kernel,
        out_shape=(jax.ShapeDtypeStruct((R, outp), jnp.float32),
                   jax.ShapeDtypeStruct((n_rt, 8, outp), jnp.float32)),
        grid=(n_rt,),
        in_specs=[
            pl.BlockSpec((tr, hidden), lambda r: (r, 0)),
            pl.BlockSpec((1, hidden), lambda r: (0, 0)),
            pl.BlockSpec((1, hidden), lambda r: (0, 0)),
            pl.BlockSpec((hidden, outp), lambda r: (0, 0)),
        ],
        out_specs=(
            pl.BlockSpec((tr, outp), lambda r: (r, 0)),
            pl.BlockSpec((None, 8, outp), lambda r: (r, 0, 0)),
        ),
        compiler_params=cparams1d,
    )(y1_flat, scale1.reshape(1, hidden), bias1.reshape(1, hidden),
      w_pwl.astype(jnp.float32))

    # --- bn2: train-mode batch statistics from fused partial sums -----------
    cnt2 = float(R)
    mean2 = jnp.sum(st2[:, 0, :], axis=0) / cnt2
    var2 = jnp.maximum(jnp.sum(st2[:, 1, :], axis=0) / cnt2 - mean2 * mean2, 0.0)
    scale2 = (gamma2 * jax.lax.rsqrt(var2 + eps)).astype(jnp.float32)
    bias2 = (beta2 - mean2 * scale2).astype(jnp.float32)

    # --- kernel 3: BN2 affine (+ residual), lane-dense flattened rows -------
    if identity:
        x_flat = x.reshape(R, Cin)                  # stride==1 -> same spatial size
        out_flat = pl.pallas_call(
            _bn_res_kernel,
            out_shape=jax.ShapeDtypeStruct((R, outp), jnp.float32),
            grid=(n_rt,),
            in_specs=[
                pl.BlockSpec((tr, outp), lambda r: (r, 0)),
                pl.BlockSpec((1, outp), lambda r: (0, 0)),
                pl.BlockSpec((1, outp), lambda r: (0, 0)),
                pl.BlockSpec((tr, outp), lambda r: (r, 0)),
            ],
            out_specs=pl.BlockSpec((tr, outp), lambda r: (r, 0)),
            compiler_params=cparams1d,
        )(y2_flat, scale2.reshape(1, outp), bias2.reshape(1, outp), x_flat)
    else:
        out_flat = pl.pallas_call(
            _bn_kernel,
            out_shape=jax.ShapeDtypeStruct((R, outp), jnp.float32),
            grid=(n_rt,),
            in_specs=[
                pl.BlockSpec((tr, outp), lambda r: (r, 0)),
                pl.BlockSpec((1, outp), lambda r: (0, 0)),
                pl.BlockSpec((1, outp), lambda r: (0, 0)),
            ],
            out_specs=pl.BlockSpec((tr, outp), lambda r: (r, 0)),
            compiler_params=cparams1d,
        )(y2_flat, scale2.reshape(1, outp), bias2.reshape(1, outp))

    out = out_flat.reshape(N, Ho, Wo, outp)
    return jnp.transpose(out, (0, 3, 1, 2))                      # NHWC -> NCHW


# ----------------------------------------------------------------------------
# Pure-JAX reference (same math, XLA conv) for validation
# ----------------------------------------------------------------------------
def edge_residual_reference(x_nchw, params, *, stride):
    w_exp, gamma1, beta1, w_pwl, gamma2, beta2 = params
    eps = 1e-5
    Cin = x_nchw.shape[1]
    outp = w_pwl.shape[-1]
    identity = (stride == 1 and Cin == outp)

    x = jnp.transpose(x_nchw, (0, 2, 3, 1))
    y1 = jax.lax.conv_general_dilated(
        x, w_exp, (stride, stride), ((1, 1), (1, 1)),
        dimension_numbers=("NHWC", "HWIO", "NHWC"))
    m1, v1 = jnp.mean(y1, (0, 1, 2)), jnp.var(y1, (0, 1, 2))
    z = (y1 - m1) * jax.lax.rsqrt(v1 + eps) * gamma1 + beta1
    z = z * jax.nn.sigmoid(z)
    y2 = jnp.einsum("nhwc,cd->nhwd", z, w_pwl)
    m2, v2 = jnp.mean(y2, (0, 1, 2)), jnp.var(y2, (0, 1, 2))
    o = (y2 - m2) * jax.lax.rsqrt(v2 + eps) * gamma2 + beta2
    if identity:
        o = o + x
    return jnp.transpose(o, (0, 3, 1, 2))


if __name__ == "__main__":
    # Small shapes consistent with the module: inp=4, outp=4, stride=1, expand_ratio=4
    N, Cin, Hin, Win = 2, 4, 16, 16
    stride, expand_ratio, outp = 1, 4, 4
    hidden = round(Cin * expand_ratio)

    key = jax.random.PRNGKey(0)
    ks = jax.random.split(key, 7)
    x = jax.random.normal(ks[0], (N, Cin, Hin, Win), jnp.float32)
    # conv_exp: PyTorch (hidden, Cin, 3, 3) -> stored here directly as HWIO (3, 3, Cin, hidden)
    w_exp = 0.1 * jax.random.normal(ks[1], (3, 3, Cin, hidden), jnp.float32)
    gamma1 = 1.0 + 0.1 * jax.random.normal(ks[2], (hidden,), jnp.float32)
    beta1 = 0.1 * jax.random.normal(ks[3], (hidden,), jnp.float32)
    # conv_pwl: PyTorch (outp, hidden, 1, 1) -> stored as (hidden, outp)
    w_pwl = 0.1 * jax.random.normal(ks[4], (hidden, outp), jnp.float32)
    gamma2 = 1.0 + 0.1 * jax.random.normal(ks[5], (outp,), jnp.float32)
    beta2 = 0.1 * jax.random.normal(ks[6], (outp,), jnp.float32)

    params = (w_exp, gamma1, beta1, w_pwl, gamma2, beta2)

    fwd = jax.jit(functools.partial(edge_residual_forward, stride=stride))
    out = fwd(x, params)
    out = jax.block_until_ready(out)

    ref = edge_residual_reference(x, params, stride=stride)
    assert out.shape == (N, outp, Hin // stride, Win // stride)
    assert jnp.allclose(out, ref, atol=1e-4, rtol=1e-4), "mismatch vs JAX reference"

    # TODO(synk): BatchNorm running-stat (momentum) buffer updates are a training
    # side effect and are not modeled; forward output does not depend on them.

    print("KERNEL_OK")
</pallas_src>

<mosaic_0001>
module attributes {stable_mosaic.version = 11 : i64} {
  func.func @_conv3x3_stats_kernel(%arg0: i32, %arg1: i32, %arg2: memref<1x18x18x4xf32, #tpu.memory_space<vmem>>, %arg3: memref<36x16xf32, #tpu.memory_space<vmem>>, %arg4: memref<1x8x16x16xf32, #tpu.memory_space<vmem>>, %arg5: memref<1x8x16xf32, #tpu.memory_space<vmem>>) attributes {dimension_semantics = [#tpu.dimension_semantics<parallel>, #tpu.dimension_semantics<parallel>], iteration_bounds = array<i64: 2, 2>, scalar_prefetch = 0 : i64, scratch_operands = 0 : i64, tpu.core_type = #tpu.core_type<tc>, window_params = [{transform_indices = @transform_0, window_bounds = array<i64: 1, 18, 18, 4>}, {pipeline_mode = #tpu.pipeline_mode<synchronous>, transform_indices = @transform_1, window_bounds = array<i64: 36, 16>}, {transform_indices = @transform_2, window_bounds = array<i64: 1, 8, 16, 16>}, {transform_indices = @transform_3, window_bounds = array<i64: 1, 8, 16>}]} {
    %c8_i32 = arith.constant 8 : i32
    %0 = arith.muli %arg1, %c8_i32 : i32
    %1 = tpu.assume_multiple %0, 8 : i32
    %c0 = arith.constant 0 : index
    %2 = arith.index_cast %1 : i32 to index
    %c0_0 = arith.constant 0 : index
    %c0_1 = arith.constant 0 : index
    %3 = vector.load %arg2[%c0, %2, %c0_0, %c0_1] : memref<1x18x18x4xf32, #tpu.memory_space<vmem>>, vector<1x10x18x4xf32>
    %4 = vector.shape_cast %3 : vector<1x10x18x4xf32> to vector<10x18x4xf32>
    %5 = vector.extract_strided_slice %4 {offsets = [0, 0, 0], sizes = [8, 16, 4], strides = [1, 1, 1]} : vector<10x18x4xf32> to vector<8x16x4xf32>
    %6 = vector.extract_strided_slice %4 {offsets = [0, 1, 0], sizes = [8, 16, 4], strides = [1, 1, 1]} : vector<10x18x4xf32> to vector<8x16x4xf32>
    %7 = vector.extract_strided_slice %4 {offsets = [0, 2, 0], sizes = [8, 16, 4], strides = [1, 1, 1]} : vector<10x18x4xf32> to vector<8x16x4xf32>
    %8 = vector.extract_strided_slice %4 {offsets = [1, 0, 0], sizes = [8, 16, 4], strides = [1, 1, 1]} : vector<10x18x4xf32> to vector<8x16x4xf32>
    %9 = vector.extract_strided_slice %4 {offsets = [1, 1, 0], sizes = [8, 16, 4], strides = [1, 1, 1]} : vector<10x18x4xf32> to vector<8x16x4xf32>
    %10 = vector.extract_strided_slice %4 {offsets = [1, 2, 0], sizes = [8, 16, 4], strides = [1, 1, 1]} : vector<10x18x4xf32> to vector<8x16x4xf32>
    %11 = vector.extract_strided_slice %4 {offsets = [2, 0, 0], sizes = [8, 16, 4], strides = [1, 1, 1]} : vector<10x18x4xf32> to vector<8x16x4xf32>
    %12 = vector.extract_strided_slice %4 {offsets = [2, 1, 0], sizes = [8, 16, 4], strides = [1, 1, 1]} : vector<10x18x4xf32> to vector<8x16x4xf32>
    %13 = vector.extract_strided_slice %4 {offsets = [2, 2, 0], sizes = [8, 16, 4], strides = [1, 1, 1]} : vector<10x18x4xf32> to vector<8x16x4xf32>
    %14 = tpu.concatenate %5, %6, %7, %8, %9, %10, %11, %12, %13 in 2 : vector<8x16x4xf32>, vector<8x16x4xf32>, vector<8x16x4xf32>, vector<8x16x4xf32>, vector<8x16x4xf32>, vector<8x16x4xf32>, vector<8x16x4xf32>, vector<8x16x4xf32>, vector<8x16x4xf32> -> vector<8x16x36xf32>
    %15 = vector.shape_cast %14 : vector<8x16x36xf32> to vector<128x36xf32>
    %c0_2 = arith.constant 0 : index
    %c0_3 = arith.constant 0 : index
    %16 = vector.load %arg3[%c0_2, %c0_3] : memref<36x16xf32, #tpu.memory_space<vmem>>, vector<36x16xf32>
    %cst = arith.constant dense<0.000000e+00> : vector<128x16xf32>
    %17 = tpu.matmul %15, %16, %cst {dimension_numbers = #tpu.dot_dimension_numbers<[1], [0], [0], [1], [0, 0, 1, 1], [], []>} : vector<128x36xf32>, vector<36x16xf32>, vector<128x16xf32> -> vector<128x16xf32>
    %18 = vector.shape_cast %17 : vector<128x16xf32> to vector<8x16x16xf32>
    %c0_4 = arith.constant 0 : index
    %c0_5 = arith.constant 0 : index
    %c0_6 = arith.constant 0 : index
    %c0_7 = arith.constant 0 : index
    %19 = vector.load %arg4[%c0_4, %c0_5, %c0_6, %c0_7] : memref<1x8x16x16xf32, #tpu.memory_space<vmem>>, vector<1x8x16x16xf32>
    %20 = vector.shape_cast %19 : vector<1x8x16x16xf32> to vector<8x16x16xf32>
    %21 = vector.shape_cast %18 : vector<8x16x16xf32> to vector<1x8x16x16xf32>
    tpu.vector_store %arg4[%c0_4, %c0_5, %c0_6, %c0_7], %21 {strides = array<i32>} : memref<1x8x16x16xf32, #tpu.memory_space<vmem>>, vector<1x8x16x16xf32>,
    %cst_8 = arith.constant dense<0.000000e+00> : vector<16xf32>
    %22 = vector.multi_reduction <add>, %17, %cst_8 [0] : vector<128x16xf32> to vector<16xf32>
    %23 = vector.shape_cast %22 : vector<16xf32> to vector<1x16xf32>
    %24 = arith.mulf %17, %17 : vector<128x16xf32>
    %cst_9 = arith.constant dense<0.000000e+00> : vector<16xf32>
    %25 = vector.multi_reduction <add>, %24, %cst_9 [0] : vector<128x16xf32> to vector<16xf32>
    %26 = vector.shape_cast %25 : vector<16xf32> to vector<1x16xf32>
    %cst_10 = arith.constant 0.000000e+00 : f32
    %27 = vector.broadcast %cst_10 : f32 to vector<6x16xf32>
    %28 = tpu.concatenate %23, %26, %27 in 0 : vector<1x16xf32>, vector<1x16xf32>, vector<6x16xf32> -> vector<8x16xf32>
    %c0_11 = arith.constant 0 : index
    %c0_12 = arith.constant 0 : index
    %c0_13 = arith.constant 0 : index
    %29 = vector.load %arg5[%c0_11, %c0_12, %c0_13] : memref<1x8x16xf32, #tpu.memory_space<vmem>>, vector<1x8x16xf32>
    %30 = vector.shape_cast %29 : vector<1x8x16xf32> to vector<8x16xf32>
    %31 = vector.shape_cast %28 : vector<8x16xf32> to vector<1x8x16xf32>
    tpu.vector_store %arg5[%c0_11, %c0_12, %c0_13], %31 {strides = array<i32>} : memref<1x8x16xf32, #tpu.memory_space<vmem>>, vector<1x8x16xf32>,
    return
  }
  func.func @transform_0(%arg0: i32, %arg1: i32) -> (i32, i32, i32, i32) {
    %c0_i32 = arith.constant 0 : i32
    %c0_i32_0 = arith.constant 0 : i32
    %c0_i32_1 = arith.constant 0 : i32
    %c0_i32_2 = arith.constant 0 : i32
    return %arg0, %c0_i32, %c0_i32_0, %c0_i32_1 : i32, i32, i32, i32
  }
  func.func @transform_1(%arg0: i32, %arg1: i32) -> (i32, i32) {
    %c0_i32 = arith.constant 0 : i32
    %c0_i32_0 = arith.constant 0 : i32
    %c0_i32_1 = arith.constant 0 : i32
    return %c0_i32, %c0_i32_0 : i32, i32
  }
  func.func @transform_2(%arg0: i32, %arg1: i32) -> (i32, i32, i32, i32) {
    %c0_i32 = arith.constant 0 : i32
    %c0_i32_0 = arith.constant 0 : i32
    %c0_i32_1 = arith.constant 0 : i32
    return %arg0, %arg1, %c0_i32, %c0_i32_0 : i32, i32, i32, i32
  }
  func.func @transform_3(%arg0: i32, %arg1: i32) -> (i32, i32, i32) {
    %c2_i32 = arith.constant 2 : i32
    %0 = arith.muli %arg0, %c2_i32 : i32
    %1 = arith.addi %0, %arg1 : i32
    %c0_i32 = arith.constant 0 : i32
    %c0_i32_0 = arith.constant 0 : i32
    %c0_i32_1 = arith.constant 0 : i32
    return %1, %c0_i32, %c0_i32_0 : i32, i32, i32
  }
}

module attributes {stable_mosaic.version = 11 : i64} {
  func.func @_bn_silu_pw_stats_kernel(%arg0: i32, %arg1: memref<256x16xf32, #tpu.memory_space<vmem>>, %arg2: memref<1x16xf32, #tpu.memory_space<vmem>>, %arg3: memref<1x16xf32, #tpu.memory_space<vmem>>, %arg4: memref<16x4xf32, #tpu.memory_space<vmem>>, %arg5: memref<256x4xf32, #tpu.memory_space<vmem>>, %arg6: memref<1x8x4xf32, #tpu.memory_space<vmem>>) attributes {dimension_semantics = [#tpu.dimension_semantics<parallel>], iteration_bounds = array<i64: 2>, scalar_prefetch = 0 : i64, scratch_operands = 0 : i64, tpu.core_type = #tpu.core_type<tc>, window_params = [{transform_indices = @transform_0, window_bounds = array<i64: 256, 16>}, {pipeline_mode = #tpu.pipeline_mode<synchronous>, transform_indices = @transform_1, window_bounds = array<i64: 1, 16>}, {pipeline_mode = #tpu.pipeline_mode<synchronous>, transform_indices = @transform_2, window_bounds = array<i64: 1, 16>}, {pipeline_mode = #tpu.pipeline_mode<synchronous>, transform_indices = @transform_3, window_bounds = array<i64: 16, 4>}, {transform_indices = @transform_4, window_bounds = array<i64: 256, 4>}, {transform_indices = @transform_5, window_bounds = array<i64: 1, 8, 4>}]} {
    %c0 = arith.constant 0 : index
    %c0_0 = arith.constant 0 : index
    %0 = vector.load %arg1[%c0, %c0_0] : memref<256x16xf32, #tpu.memory_space<vmem>>, vector<256x16xf32>
    %c0_1 = arith.constant 0 : index
    %c0_2 = arith.constant 0 : index
    %1 = vector.load %arg2[%c0_1, %c0_2] : memref<1x16xf32, #tpu.memory_space<vmem>>, vector<1x16xf32>
    %2 = vector.shape_cast %1 : vector<1x16xf32> to vector<16xf32>
    %3 = vector.shape_cast %2 : vector<16xf32> to vector<1x16xf32>
    %4 = vector.broadcast %3 : vector<1x16xf32> to vector<256x16xf32>
    %5 = arith.mulf %0, %4 : vector<256x16xf32>
    %c0_3 = arith.constant 0 : index
    %c0_4 = arith.constant 0 : index
    %6 = vector.load %arg3[%c0_3, %c0_4] : memref<1x16xf32, #tpu.memory_space<vmem>>, vector<1x16xf32>
    %7 = vector.shape_cast %6 : vector<1x16xf32> to vector<16xf32>
    %8 = vector.shape_cast %7 : vector<16xf32> to vector<1x16xf32>
    %9 = vector.broadcast %8 : vector<1x16xf32> to vector<256x16xf32>
    %10 = arith.addf %5, %9 : vector<256x16xf32>
    %11 = arith.negf %10 : vector<256x16xf32>
    %12 = math.exp %11 : vector<256x16xf32>
    %cst = arith.constant 1.000000e+00 : f32
    %13 = vector.broadcast %cst : f32 to vector<256x16xf32>
    %14 = arith.addf %13, %12 : vector<256x16xf32>
    %15 = arith.divf %13, %14 : vector<256x16xf32>
    %16 = arith.mulf %10, %15 : vector<256x16xf32>
    %c0_5 = arith.constant 0 : index
    %c0_6 = arith.constant 0 : index
    %17 = vector.load %arg4[%c0_5, %c0_6] : memref<16x4xf32, #tpu.memory_space<vmem>>, vector<16x4xf32>
    %cst_7 = arith.constant dense<0.000000e+00> : vector<256x4xf32>
    %18 = tpu.matmul %16, %17, %cst_7 {dimension_numbers = #tpu.dot_dimension_numbers<[1], [0], [0], [1], [0, 0, 1, 1], [], []>} : vector<256x16xf32>, vector<16x4xf32>, vector<256x4xf32> -> vector<256x4xf32>
    %c0_8 = arith.constant 0 : index
    %c0_9 = arith.constant 0 : index
    %19 = vector.load %arg5[%c0_8, %c0_9] : memref<256x4xf32, #tpu.memory_space<vmem>>, vector<256x4xf32>
    tpu.vector_store %arg5[%c0_8, %c0_9], %18 {strides = array<i32>} : memref<256x4xf32, #tpu.memory_space<vmem>>, vector<256x4xf32>,
    %cst_10 = arith.constant dense<0.000000e+00> : vector<4xf32>
    %20 = vector.multi_reduction <add>, %18, %cst_10 [0] : vector<256x4xf32> to vector<4xf32>
    %21 = vector.shape_cast %20 : vector<4xf32> to vector<1x4xf32>
    %22 = arith.mulf %18, %18 : vector<256x4xf32>
    %cst_11 = arith.constant dense<0.000000e+00> : vector<4xf32>
    %23 = vector.multi_reduction <add>, %22, %cst_11 [0] : vector<256x4xf32> to vector<4xf32>
    %24 = vector.shape_cast %23 : vector<4xf32> to vector<1x4xf32>
    %cst_12 = arith.constant 0.000000e+00 : f32
    %25 = vector.broadcast %cst_12 : f32 to vector<6x4xf32>
    %26 = tpu.concatenate %21, %24, %25 in 0 : vector<1x4xf32>, vector<1x4xf32>, vector<6x4xf32> -> vector<8x4xf32>
    %c0_13 = arith.constant 0 : index
    %c0_14 = arith.constant 0 : index
    %c0_15 = arith.constant 0 : index
    %27 = vector.load %arg6[%c0_13, %c0_14, %c0_15] : memref<1x8x4xf32, #tpu.memory_space<vmem>>, vector<1x8x4xf32>
    %28 = vector.shape_cast %27 : vector<1x8x4xf32> to vector<8x4xf32>
    %29 = vector.shape_cast %26 : vector<8x4xf32> to vector<1x8x4xf32>
    tpu.vector_store %arg6[%c0_13, %c0_14, %c0_15], %29 {strides = array<i32>} : memref<1x8x4xf32, #tpu.memory_space<vmem>>, vector<1x8x4xf32>,
    return
  }
  func.func @transform_0(%arg0: i32) -> (i32, i32) {
    %c0_i32 = arith.constant 0 : i32
    %c0_i32_0 = arith.constant 0 : i32
    return %arg0, %c0_i32 : i32, i32
  }
  func.func @transform_1(%arg0: i32) -> (i32, i32) {
    %c0_i32 = arith.constant 0 : i32
    %c0_i32_0 = arith.constant 0 : i32
    %c0_i32_1 = arith.constant 0 : i32
    return %c0_i32, %c0_i32_0 : i32, i32
  }
  func.func @transform_2(%arg0: i32) -> (i32, i32) {
    %c0_i32 = arith.constant 0 : i32
    %c0_i32_0 = arith.constant 0 : i32
    %c0_i32_1 = arith.constant 0 : i32
    return %c0_i32, %c0_i32_0 : i32, i32
  }
  func.func @transform_3(%arg0: i32) -> (i32, i32) {
    %c0_i32 = arith.constant 0 : i32
    %c0_i32_0 = arith.constant 0 : i32
    %c0_i32_1 = arith.constant 0 : i32
    return %c0_i32, %c0_i32_0 : i32, i32
  }
  func.func @transform_4(%arg0: i32) -> (i32, i32) {
    %c0_i32 = arith.constant 0 : i32
    %c0_i32_0 = arith.constant 0 : i32
    return %arg0, %c0_i32 : i32, i32
  }
  func.func @transform_5(%arg0: i32) -> (i32, i32, i32) {
    %c0_i32 = arith.constant 0 : i32
    %c0_i32_0 = arith.constant 0 : i32
    %c0_i32_1 = arith.constant 0 : i32
    return %arg0, %c0_i32, %c0_i32_0 : i32, i32, i32
  }
}

module attributes {stable_mosaic.version = 11 : i64} {
  func.func @_bn_res_kernel(%arg0: i32, %arg1: memref<256x4xf32, #tpu.memory_space<vmem>>, %arg2: memref<1x4xf32, #tpu.memory_space<vmem>>, %arg3: memref<1x4xf32, #tpu.memory_space<vmem>>, %arg4: memref<256x4xf32, #tpu.memory_space<vmem>>, %arg5: memref<256x4xf32, #tpu.memory_space<vmem>>) attributes {dimension_semantics = [#tpu.dimension_semantics<parallel>], iteration_bounds = array<i64: 2>, scalar_prefetch = 0 : i64, scratch_operands = 0 : i64, tpu.core_type = #tpu.core_type<tc>, window_params = [{transform_indices = @transform_0, window_bounds = array<i64: 256, 4>}, {pipeline_mode = #tpu.pipeline_mode<synchronous>, transform_indices = @transform_1, window_bounds = array<i64: 1, 4>}, {pipeline_mode = #tpu.pipeline_mode<synchronous>, transform_indices = @transform_2, window_bounds = array<i64: 1, 4>}, {transform_indices = @transform_3, window_bounds = array<i64: 256, 4>}, {transform_indices = @transform_4, window_bounds = array<i64: 256, 4>}]} {
    %c0 = arith.constant 0 : index
    %c0_0 = arith.constant 0 : index
    %0 = vector.load %arg1[%c0, %c0_0] : memref<256x4xf32, #tpu.memory_space<vmem>>, vector<256x4xf32>
    %c0_1 = arith.constant 0 : index
    %c0_2 = arith.constant 0 : index
    %1 = vector.load %arg2[%c0_1, %c0_2] : memref<1x4xf32, #tpu.memory_space<vmem>>, vector<1x4xf32>
    %2 = vector.shape_cast %1 : vector<1x4xf32> to vector<4xf32>
    %3 = vector.shape_cast %2 : vector<4xf32> to vector<1x4xf32>
    %4 = vector.broadcast %3 : vector<1x4xf32> to vector<256x4xf32>
    %5 = arith.mulf %0, %4 : vector<256x4xf32>
    %c0_3 = arith.constant 0 : index
    %c0_4 = arith.constant 0 : index
    %6 = vector.load %arg3[%c0_3, %c0_4] : memref<1x4xf32, #tpu.memory_space<vmem>>, vector<1x4xf32>
    %7 = vector.shape_cast %6 : vector<1x4xf32> to vector<4xf32>
    %8 = vector.shape_cast %7 : vector<4xf32> to vector<1x4xf32>
    %9 = vector.broadcast %8 : vector<1x4xf32> to vector<256x4xf32>
    %10 = arith.addf %5, %9 : vector<256x4xf32>
    %c0_5 = arith.constant 0 : index
    %c0_6 = arith.constant 0 : index
    %11 = vector.load %arg4[%c0_5, %c0_6] : memref<256x4xf32, #tpu.memory_space<vmem>>, vector<256x4xf32>
    %12 = arith.addf %10, %11 : vector<256x4xf32>
    %c0_7 = arith.constant 0 : index
    %c0_8 = arith.constant 0 : index
    %13 = vector.load %arg5[%c0_7, %c0_8] : memref<256x4xf32, #tpu.memory_space<vmem>>, vector<256x4xf32>
    tpu.vector_store %arg5[%c0_7, %c0_8], %12 {strides = array<i32>} : memref<256x4xf32, #tpu.memory_space<vmem>>, vector<256x4xf32>,
    return
  }
  func.func @transform_0(%arg0: i32) -> (i32, i32) {
    %c0_i32 = arith.constant 0 : i32
    %c0_i32_0 = arith.constant 0 : i32
    return %arg0, %c0_i32 : i32, i32
  }
  func.func @transform_1(%arg0: i32) -> (i32, i32) {
    %c0_i32 = arith.constant 0 : i32
    %c0_i32_0 = arith.constant 0 : i32
    %c0_i32_1 = arith.constant 0 : i32
    return %c0_i32, %c0_i32_0 : i32, i32
  }
  func.func @transform_2(%arg0: i32) -> (i32, i32) {
    %c0_i32 = arith.constant 0 : i32
    %c0_i32_0 = arith.constant 0 : i32
    %c0_i32_1 = arith.constant 0 : i32
    return %c0_i32, %c0_i32_0 : i32, i32
  }
  func.func @transform_3(%arg0: i32) -> (i32, i32) {
    %c0_i32 = arith.constant 0 : i32
    %c0_i32_0 = arith.constant 0 : i32
    return %arg0, %c0_i32 : i32, i32
  }
  func.func @transform_4(%arg0: i32) -> (i32, i32) {
    %c0_i32 = arith.constant 0 : i32
    %c0_i32_0 = arith.constant 0 : i32
    return %arg0, %c0_i32 : i32, i32
  }
}

</mosaic_0001>

<llo_original>
// kernel: edge_residual_forward.5
$region0: #{edge_residual_forward.5}
  #allocation0 [shape = 'u32[]', space=smem, size = 0x4, offset = 0x4, fixed_abs, tag = 'smem constant byte address 0x4 - core index']
  #allocation1 [shape = 'u32[144,128]{1,0:T(1,128)}', space=vmem, size = 0x12000, scoped, tag = 'internal scratch']
  %s0 = inlined_call_operand.vmem [shape: f32[512,4], index: 0, kind: input, shape index: {}]
  %s1 = inlined_call_operand.vmem [shape: f32[1,4], index: 1, kind: input, shape index: {}]
  %s2 = inlined_call_operand.vmem [shape: f32[1,4], index: 2, kind: input, shape index: {}]
  %s3 = inlined_call_operand.vmem [shape: f32[512,4], index: 3, kind: input, shape index: {}]
  %s4 = inlined_call_operand.vmem [shape: f32[512,4], index: 4, kind: output, shape index: {}]
  %s5 = sld [smem:[#allocation0]]
  $region49: #{edge_residual_forward.5} parent=0
    _
  %s7 = ssub.s32 1, %s5
  %s8 = scalar_select 0, %s7, %s5
  loop: start=0, step=1, limit=4
  $region2: #{edge_residual_forward.5} parent=0 // loop_pre_header
    _
  $region3: #{edge_residual_forward.5} parent=0 // loop_header
    %s10 = sphi 0, %s14
    %p11 = scmp.ge.s32.totalorder %s10, 4
    %s20 = sphi 0, %s22
    %s23 = sphi 0, %s20
    %s24 = sphi 0, %s23
    %s40 = sphi 0, %s24
    %s44 = sphi 0, %s44
    %s46 = sphi 0, %s44
    %s47 = sphi 0, %s46
    %s61 = sphi 0, %s47
    %s65 = sphi 0, %s65
    %s67 = sphi 0, %s65
    %s68 = sphi 0, %s67
    %s82 = sphi 0, %s68
    %s88 = sphi 0, %s90
    %s91 = sphi 0, %s88
    %s92 = sphi 0, %s91
    %s108 = sphi 0, %s92
    %s114 = sphi 0, %s116
    %s117 = sphi 0, %s114
    %s118 = sphi 0, %s117
    %s134 = sphi 0, %s118
  $region4: #{edge_residual_forward.5} parent=0 // loop_header_branch
    %13 = sbr.rel (%p11) target = $region8
  $region5: #{edge_residual_forward.5} parent=0 // loop_body
    %s15 = ssub.s32 %s10, 1
    %s16 = ssub.s32 %s10, 2
    %s17 = sadd.s32 %s10, 1
    %s18 = ssub.s32 %s10, %s17
    %p19 = scmp.eq.s32.totalorder %s18, 0
    %s21 = sadd.s32 %s20, 1
    %s22 = scalar_select %p19, %s20, %s21
    %p25 = pneg %p19
    %p26 = scmp.eq.s32.totalorder %s10, 1
    %p27 = por %p25, %p26
    %p28 = scmp.ne.s32.totalorder %s20, %s23
    %p29 = scmp.eq.s32.totalorder %s10, 0
    %p30 = por %p28, %p29
    %p31 = scmp.ne.s32.totalorder %s20, %s23
    %p32 = scmp.eq.s32.totalorder %s15, 1
    %p33 = por %p31, %p32
    %p34 = scmp.ne.s32.totalorder %s23, %s24
    %p35 = scmp.eq.s32.totalorder %s15, 0
    %p36 = por %p34, %p35
    %p37 = scmp.ne.s32.totalorder %s23, %s24
    %p38 = scmp.eq.s32.totalorder %s16, 1
    %p39 = por %p37, %p38
    %p41 = scmp.ne.s32.totalorder %s24, %s40
    %p42 = scmp.eq.s32.totalorder %s16, 0
    %p43 = por %p41, %p42
    %s45 = sadd.s32 %s44, 1
    %p48 = scmp.eq.s32.totalorder %s10, 1
    %p49 = scmp.ne.s32.totalorder %s44, %s46
    %p50 = scmp.eq.s32.totalorder %s10, 0
    %p51 = por %p49, %p50
    %p52 = scmp.ne.s32.totalorder %s44, %s46
    %p53 = scmp.eq.s32.totalorder %s15, 1
    %p54 = por %p52, %p53
    %p55 = scmp.ne.s32.totalorder %s46, %s47
    %p56 = scmp.eq.s32.totalorder %s15, 0
    %p57 = por %p55, %p56
    %p58 = scmp.ne.s32.totalorder %s46, %s47
    %p59 = scmp.eq.s32.totalorder %s16, 1
    %p60 = por %p58, %p59
    %p62 = scmp.ne.s32.totalorder %s47, %s61
    %p63 = scmp.eq.s32.totalorder %s16, 0
    %p64 = por %p62, %p63
    %s66 = sadd.s32 %s65, 1
    %p69 = scmp.eq.s32.totalorder %s10, 1
    %p70 = scmp.ne.s32.totalorder %s65, %s67
    %p71 = scmp.eq.s32.totalorder %s10, 0
    %p72 = por %p70, %p71
    %p73 = scmp.ne.s32.totalorder %s65, %s67
    %p74 = scmp.eq.s32.totalorder %s15, 1
    %p75 = por %p73, %p74
    %p76 = scmp.ne.s32.totalorder %s67, %s68
    %p77 = scmp.eq.s32.totalorder %s15, 0
    %p78 = por %p76, %p77
    %p79 = scmp.ne.s32.totalorder %s67, %s68
    %p80 = scmp.eq.s32.totalorder %s16, 1
    %p81 = por %p79, %p80
    %p83 = scmp.ne.s32.totalorder %s68, %s82
    %p84 = scmp.eq.s32.totalorder %s16, 0
    %p85 = por %p83, %p84
    %s86 = ssub.s32 %s10, %s17
    %p87 = scmp.eq.s32.totalorder %s86, 0
    %s89 = sadd.s32 %s88, 1
    %s90 = scalar_select %p87, %s88, %s89
    %p93 = pneg %p87
    %p94 = scmp.eq.s32.totalorder %s10, 1
    %p95 = por %p93, %p94
    %p96 = scmp.ne.s32.totalorder %s88, %s91
    %p97 = scmp.eq.s32.totalorder %s10, 0
    %p98 = por %p96, %p97
    %p99 = scmp.ne.s32.totalorder %s88, %s91
    %p100 = scmp.eq.s32.totalorder %s15, 1
    %p101 = por %p99, %p100
    %p102 = scmp.ne.s32.totalorder %s91, %s92
    %p103 = scmp.eq.s32.totalorder %s15, 0
    %p104 = por %p102, %p103
    %p105 = scmp.ne.s32.totalorder %s91, %s92
    %p106 = scmp.eq.s32.totalorder %s16, 1
    %p107 = por %p105, %p106
    %p109 = scmp.ne.s32.totalorder %s92, %s108
    %p110 = scmp.eq.s32.totalorder %s16, 0
    %p111 = por %p109, %p110
    %s112 = ssub.s32 %s10, %s17
    %p113 = scmp.eq.s32.totalorder %s112, 0
    %s115 = sadd.s32 %s114, 1
    %s116 = scalar_select %p113, %s114, %s115
    %p119 = pneg %p113
    %p120 = scmp.eq.s32.totalorder %s10, 1
    %p121 = por %p119, %p120
    %p122 = scmp.ne.s32.totalorder %s114, %s117
    %p123 = scmp.eq.s32.totalorder %s10, 0
    %p124 = por %p122, %p123
    %p125 = scmp.ne.s32.totalorder %s114, %s117
    %p126 = scmp.eq.s32.totalorder %s15, 1
    %p127 = por %p125, %p126
    %p128 = scmp.ne.s32.totalorder %s117, %s118
    %p129 = scmp.eq.s32.totalorder %s15, 0
    %p130 = por %p128, %p129
    %p131 = scmp.ne.s32.totalorder %s117, %s118
    %p132 = scmp.eq.s32.totalorder %s16, 1
    %p133 = por %p131, %p132
    %p135 = scmp.ne.s32.totalorder %s118, %s134
    %p136 = scmp.eq.s32.totalorder %s16, 0
    %p137 = por %p135, %p136
    %p138 = scmp.le.s32.totalorder 1, %s10
    %p139 = scmp.lt.s32.totalorder %s10, 3
    %p140 = pnand %p138, %p139
    %p141 = pneg %p140
    // Predicated region
    $region9: #{edge_residual_forward.5} parent=5 // pred_check
      _
    $region10: #{edge_residual_forward.5} parent=5 // pred_check_branch
      %143 = sbr.rel (%p140) target = $region12
    $region11: #{edge_residual_forward.5} parent=5 // pred_region
      %s144 = ssub.s32 %s10, 1
      // Predicated region
      $region13: #{edge_residual_forward.5} parent=11 // pred_check
        %p145 = pneg %p57
      $region14: #{edge_residual_forward.5} parent=11 // pred_check_branch
        %147 = sbr.rel (%p145) target = $region16
      $region15: #{edge_residual_forward.5} parent=11 // pred_region
        _
      $region16: #{edge_residual_forward.5} parent=11 // pred_fallthru
        _
      // Predicated region
      $region17: #{edge_residual_forward.5} parent=11 // pred_check
        %p148 = pneg %p78
      $region18: #{edge_residual_forward.5} parent=11 // pred_check_branch
        %150 = sbr.rel (%p148) target = $region20
      $region19: #{edge_residual_forward.5} parent=11 // pred_region
        _
      $region20: #{edge_residual_forward.5} parent=11 // pred_fallthru
        _
    $region12: #{edge_residual_forward.5} parent=5 // pred_fallthru
      _
    %p151 = scmp.lt.s32.totalorder %s10, 2
    // Predicated region
    $region21: #{edge_residual_forward.5} parent=5 // pred_check
      %p152 = pneg %p151
    $region22: #{edge_residual_forward.5} parent=5 // pred_check_branch
      %154 = sbr.rel (%p152) target = $region24
    $region23: #{edge_residual_forward.5} parent=5 // pred_region
      // Predicated region
      $region25: #{edge_residual_forward.5} parent=23 // pred_check
        %p155 = pneg %p30
      $region26: #{edge_residual_forward.5} parent=23 // pred_check_branch
        %157 = sbr.rel (%p155) target = $region28
      $region27: #{edge_residual_forward.5} parent=23 // pred_region
        %s158 = smul.u32 32, %s10
        %p159 = scmp.lt.s32.totalorder %s158, 63
        %s160 = scalar_select %p159, %s158, 63
        %s161 = smul.addr %s160, 8
        %s162 = scalar_lea.vmem %s0, %s161
        %s163 = smul.u32 32, %s10
      $region28: #{edge_residual_forward.5} parent=23 // pred_fallthru
        _
      // Predicated region
      $region29: #{edge_residual_forward.5} parent=23 // pred_check
        %p164 = pneg %p98
      $region30: #{edge_residual_forward.5} parent=23 // pred_check_branch
        %166 = sbr.rel (%p164) target = $region32
      $region31: #{edge_residual_forward.5} parent=23 // pred_region
        %s167 = smul.u32 32, %s10
        %p168 = scmp.lt.s32.totalorder %s167, 63
        %s169 = scalar_select %p168, %s167, 63
        %s170 = smul.addr %s169, 8
        %s171 = scalar_lea.vmem %s3, %s170
        %s172 = smul.u32 32, %s10
      $region32: #{edge_residual_forward.5} parent=23 // pred_fallthru
        _
    $region24: #{edge_residual_forward.5} parent=5 // pred_fallthru
      _
    %p173 = scmp.le.s32.totalorder 1, %s10
    %p174 = scmp.lt.s32.totalorder %s10, 3
    %p175 = pnand %p173, %p174
    %p176 = pneg %p175
    // Predicated region
    $region33: #{edge_residual_forward.5} parent=5 // pred_check
      _
    $region34: #{edge_residual_forward.5} parent=5 // pred_check_branch
      %178 = sbr.rel (%p175) target = $region36
    $region35: #{edge_residual_forward.5} parent=5 // pred_region
      %s179 = ssub.s32 %s10, 1
      %s180 = smul.u32 32, %s15
      %p181 = scmp.lt.s32.totalorder %s180, 63
      %s182 = scalar_select %p181, %s180, 63
      %s183 = smul.addr %s182, 8
      %s184 = scalar_lea.vmem %s0, %s183
      %p185 = pneg %p36
      %p186 = pneg %p33
      %p187 = pneg %p57
      %p188 = pneg %p54
      %p189 = pneg %p78
      %p190 = pneg %p75
      %s191 = smul.u32 32, %s15
      %p192 = scmp.lt.s32.totalorder %s191, 63
      %s193 = scalar_select %p192, %s191, 63
      %s194 = smul.addr %s193, 8
      %s195 = scalar_lea.vmem %s3, %s194
      %p196 = pneg %p104
      %p197 = pneg %p101
      %p198 = pneg %p130
      %p199 = pneg %p127
      %s200 = smul.u32 32, %s15
      %p201 = scmp.lt.s32.totalorder %s200, 63
      %s202 = scalar_select %p201, %s200, 63
      %s203 = smul.addr %s202, 8
      %s204 = scalar_lea.vmem %s4, %s203
      %s205 = smul.u32 32, %s15
      %p206 = scmp.lt.s32.totalorder %s205, 63
      %s207 = scalar_select %p206, %s205, 63
      %s208 = smul.addr %s207, 8
      %s209 = scalar_lea.vmem %s0, %s208
      %s210 = smul.u32 32, %s15
      %s211 = smul.u32 32, %s15
      %p212 = scmp.lt.s32.totalorder %s211, 63
      %s213 = scalar_select %p212, %s211, 63
      %s214 = smul.addr %s213, 8
      %s215 = scalar_lea.vmem %s3, %s214
      %s216 = smul.u32 32, %s15
      %s217 = smul.u32 32, %s15
      %p218 = scmp.lt.s32.totalorder %s217, 63
      %s219 = scalar_select %p218, %s217, 63
      %s220 = smul.addr %s219, 8
      %s221 = scalar_lea.vmem %s4, %s220
      %s222 = smul.u32 32, %s15
      %v223 = vld [vmem:[%s209] sm:$0xff]
      %v224 = vld [vmem:[%s209 + $0x8] sm:$0xff]
      %v225 = vld [vmem:[%s209 + $0x10] sm:$0xff]
      %v226 = vld [vmem:[%s209 + $0x18] sm:$0xff]
      %v227 = vld [vmem:[%s209 + $0x20] sm:$0xff]
      %v228 = vld [vmem:[%s209 + $0x28] sm:$0xff]
      %v229 = vld [vmem:[%s209 + $0x30] sm:$0xff]
      %v230 = vld [vmem:[%s209 + $0x38] sm:$0xff]
      %v231 = vld [vmem:[%s209 + $0x40] sm:$0xff]
      %v232 = vld [vmem:[%s209 + $0x48] sm:$0xff]
      %v233 = vld [vmem:[%s209 + $0x50] sm:$0xff]
      %v234 = vld [vmem:[%s209 + $0x58] sm:$0xff]
      %v235 = vld [vmem:[%s209 + $0x60] sm:$0xff]
      %v236 = vld [vmem:[%s209 + $0x68] sm:$0xff]
      %v237 = vld [vmem:[%s209 + $0x70] sm:$0xff]
      %v238 = vld [vmem:[%s209 + $0x78] sm:$0xff]
      %v239 = vld [vmem:[%s209 + $0x80] sm:$0xff]
      %v240 = vld [vmem:[%s209 + $0x88] sm:$0xff]
      %v241 = vld [vmem:[%s209 + $0x90] sm:$0xff]
      %v242 = vld [vmem:[%s209 + $0x98] sm:$0xff]
      %v243 = vld [vmem:[%s209 + $0xa0] sm:$0xff]
      %v244 = vld [vmem:[%s209 + $0xa8] sm:$0xff]
      %v245 = vld [vmem:[%s209 + $0xb0] sm:$0xff]
      %v246 = vld [vmem:[%s209 + $0xb8] sm:$0xff]
      %v247 = vld [vmem:[%s209 + $0xc0] sm:$0xff]
      %v248 = vld [vmem:[%s209 + $0xc8] sm:$0xff]
      %v249 = vld [vmem:[%s209 + $0xd0] sm:$0xff]
      %v250 = vld [vmem:[%s209 + $0xd8] sm:$0xff]
      %v251 = vld [vmem:[%s209 + $0xe0] sm:$0xff]
      %v252 = vld [vmem:[%s209 + $0xe8] sm:$0xff]
      %v253 = vld [vmem:[%s209 + $0xf0] sm:$0xff]
      %v254 = vld [vmem:[%s209 + $0xf8] sm:$0xff]
      %v255 = vld [vmem:[%s1] sm:$0x1]
      %v257 = vlaneseq
      %v258 = vshrl.u32 %v257, 7
      %v259 = vsub.s32 0, %v258
      %v260 = vrot.slane %v255, %v259
      %v262 = vmul.f32 %v223, %v260
      %v263 = vmul.f32 %v224, %v260
      %v264 = vmul.f32 %v225, %v260
      %v265 = vmul.f32 %v226, %v260
      %v266 = vmul.f32 %v227, %v260
      %v267 = vmul.f32 %v228, %v260
      %v268 = vmul.f32 %v229, %v260
      %v269 = vmul.f32 %v230, %v260
      %v270 = vmul.f32 %v231, %v260
      %v271 = vmul.f32 %v232, %v260
      %v272 = vmul.f32 %v233, %v260
      %v273 = vmul.f32 %v234, %v260
      %v274 = vmul.f32 %v235, %v260
      %v275 = vmul.f32 %v236, %v260
      %v276 = vmul.f32 %v237, %v260
      %v277 = vmul.f32 %v238, %v260
      %v278 = vmul.f32 %v239, %v260
      %v279 = vmul.f32 %v240, %v260
      %v280 = vmul.f32 %v241, %v260
      %v281 = vmul.f32 %v242, %v260
      %v282 = vmul.f32 %v243, %v260
      %v283 = vmul.f32 %v244, %v260
      %v284 = vmul.f32 %v245, %v260
      %v285 = vmul.f32 %v246, %v260
      %v286 = vmul.f32 %v247, %v260
      %v287 = vmul.f32 %v248, %v260
      %v288 = vmul.f32 %v249, %v260
      %v289 = vmul.f32 %v250, %v260
      %v290 = vmul.f32 %v251, %v260
      %v291 = vmul.f32 %v252, %v260
      %v292 = vmul.f32 %v253, %v260
      %v293 = vmul.f32 %v254, %v260
      %v294 = vld [vmem:[%s2] sm:$0x1]
      %v296 = vlaneseq
      %v297 = vshrl.u32 %v296, 7
      %v298 = vsub.s32 0, %v297
      %v299 = vrot.slane %v294, %v298
      %v301 = vadd.f32 %v262, %v299
      %v302 = vadd.f32 %v263, %v299
      %v303 = vadd.f32 %v264, %v299
      %v304 = vadd.f32 %v265, %v299
      %v305 = vadd.f32 %v266, %v299
      %v306 = vadd.f32 %v267, %v299
      %v307 = vadd.f32 %v268, %v299
      %v308 = vadd.f32 %v269, %v299
      %v309 = vadd.f32 %v270, %v299
      %v310 = vadd.f32 %v271, %v299
      %v311 = vadd.f32 %v272, %v299
      %v312 = vadd.f32 %v273, %v299
      %v313 = vadd.f32 %v274, %v299
      %v314 = vadd.f32 %v275, %v299
      %v315 = vadd.f32 %v276, %v299
      %v316 = vadd.f32 %v277, %v299
      %v317 = vadd.f32 %v278, %v299
      %v318 = vadd.f32 %v279, %v299
      %v319 = vadd.f32 %v280, %v299
      %v320 = vadd.f32 %v281, %v299
      %v321 = vadd.f32 %v282, %v299
      %v322 = vadd.f32 %v283, %v299
      %v323 = vadd.f32 %v284, %v299
      %v324 = vadd.f32 %v285, %v299
      %v325 = vadd.f32 %v286, %v299
      %v326 = vadd.f32 %v287, %v299
      %v327 = vadd.f32 %v288, %v299
      %v328 = vadd.f32 %v289, %v299
      %v329 = vadd.f32 %v290, %v299
      %v330 = vadd.f32 %v291, %v299
      %v331 = vadd.f32 %v292, %v299
      %v332 = vadd.f32 %v293, %v299
      %v333 = vld [vmem:[%s215] sm:$0xff]
      %v334 = vld [vmem:[%s215 + $0x8] sm:$0xff]
      %v335 = vld [vmem:[%s215 + $0x10] sm:$0xff]
      %v336 = vld [vmem:[%s215 + $0x18] sm:$0xff]
      %v337 = vld [vmem:[%s215 + $0x20] sm:$0xff]
      %v338 = vld [vmem:[%s215 + $0x28] sm:$0xff]
      %v339 = vld [vmem:[%s215 + $0x30] sm:$0xff]
      %v340 = vld [vmem:[%s215 + $0x38] sm:$0xff]
      %v341 = vld [vmem:[%s215 + $0x40] sm:$0xff]
      %v342 = vld [vmem:[%s215 + $0x48] sm:$0xff]
      %v343 = vld [vmem:[%s215 + $0x50] sm:$0xff]
      %v344 = vld [vmem:[%s215 + $0x58] sm:$0xff]
      %v345 = vld [vmem:[%s215 + $0x60] sm:$0xff]
      %v346 = vld [vmem:[%s215 + $0x68] sm:$0xff]
      %v347 = vld [vmem:[%s215 + $0x70] sm:$0xff]
      %v348 = vld [vmem:[%s215 + $0x78] sm:$0xff]
      %v349 = vld [vmem:[%s215 + $0x80] sm:$0xff]
      %v350 = vld [vmem:[%s215 + $0x88] sm:$0xff]
      %v351 = vld [vmem:[%s215 + $0x90] sm:$0xff]
      %v352 = vld [vmem:[%s215 + $0x98] sm:$0xff]
      %v353 = vld [vmem:[%s215 + $0xa0] sm:$0xff]
      %v354 = vld [vmem:[%s215 + $0xa8] sm:$0xff]
      %v355 = vld [vmem:[%s215 + $0xb0] sm:$0xff]
      %v356 = vld [vmem:[%s215 + $0xb8] sm:$0xff]
      %v357 = vld [vmem:[%s215 + $0xc0] sm:$0xff]
      %v358 = vld [vmem:[%s215 + $0xc8] sm:$0xff]
      %v359 = vld [vmem:[%s215 + $0xd0] sm:$0xff]
      %v360 = vld [vmem:[%s215 + $0xd8] sm:$0xff]
      %v361 = vld [vmem:[%s215 + $0xe0] sm:$0xff]
      %v362 = vld [vmem:[%s215 + $0xe8] sm:$0xff]
      %v363 = vld [vmem:[%s215 + $0xf0] sm:$0xff]
      %v364 = vld [vmem:[%s215 + $0xf8] sm:$0xff]
      %v365 = vadd.f32 %v301, %v333
      %v366 = vadd.f32 %v302, %v334
      %v367 = vadd.f32 %v303, %v335
      %v368 = vadd.f32 %v304, %v336
      %v369 = vadd.f32 %v305, %v337
      %v370 = vadd.f32 %v306, %v338
      %v371 = vadd.f32 %v307, %v339
      %v372 = vadd.f32 %v308, %v340
      %v373 = vadd.f32 %v309, %v341
      %v374 = vadd.f32 %v310, %v342
      %v375 = vadd.f32 %v311, %v343
      %v376 = vadd.f32 %v312, %v344
      %v377 = vadd.f32 %v313, %v345
      %v378 = vadd.f32 %v314, %v346
      %v379 = vadd.f32 %v315, %v347
      %v380 = vadd.f32 %v316, %v348
      %v381 = vadd.f32 %v317, %v349
      %v382 = vadd.f32 %v318, %v350
      %v383 = vadd.f32 %v319, %v351
      %v384 = vadd.f32 %v320, %v352
      %v385 = vadd.f32 %v321, %v353
      %v386 = vadd.f32 %v322, %v354
      %v387 = vadd.f32 %v323, %v355
      %v388 = vadd.f32 %v324, %v356
      %v389 = vadd.f32 %v325, %v357
      %v390 = vadd.f32 %v326, %v358
      %v391 = vadd.f32 %v327, %v359
      %v392 = vadd.f32 %v328, %v360
      %v393 = vadd.f32 %v329, %v361
      %v394 = vadd.f32 %v330, %v362
      %v395 = vadd.f32 %v331, %v363
      %v396 = vadd.f32 %v332, %v364
      %vm397 = vcmask 31744
      %398 = vst.msk [vmem:[%s221] sm:$0xff] %vm397, %v365
      %399 = vst.msk [vmem:[%s221 + $0x8] sm:$0xff] %vm397, %v366
      %400 = vst.msk [vmem:[%s221 + $0x10] sm:$0xff] %vm397, %v367
      %401 = vst.msk [vmem:[%s221 + $0x18] sm:$0xff] %vm397, %v368
      %402 = vst.msk [vmem:[%s221 + $0x20] sm:$0xff] %vm397, %v369
      %403 = vst.msk [vmem:[%s221 + $0x28] sm:$0xff] %vm397, %v370
      %404 = vst.msk [vmem:[%s221 + $0x30] sm:$0xff] %vm397, %v371
      %405 = vst.msk [vmem:[%s221 + $0x38] sm:$0xff] %vm397, %v372
      %406 = vst.msk [vmem:[%s221 + $0x40] sm:$0xff] %vm397, %v373
      %407 = vst.msk [vmem:[%s221 + $0x48] sm:$0xff] %vm397, %v374
      %408 = vst.msk [vmem:[%s221 + $0x50] sm:$0xff] %vm397, %v375
      %409 = vst.msk [vmem:[%s221 + $0x58] sm:$0xff] %vm397, %v376
      %410 = vst.msk [vmem:[%s221 + $0x60] sm:$0xff] %vm397, %v377
      %411 = vst.msk [vmem:[%s221 + $0x68] sm:$0xff] %vm397, %v378
      %412 = vst.msk [vmem:[%s221 + $0x70] sm:$0xff] %vm397, %v379
      %413 = vst.msk [vmem:[%s221 + $0x78] sm:$0xff] %vm397, %v380
      %414 = vst.msk [vmem:[%s221 + $0x80] sm:$0xff] %vm397, %v381
      %415 = vst.msk [vmem:[%s221 + $0x88] sm:$0xff] %vm397, %v382
      %416 = vst.msk [vmem:[%s221 + $0x90] sm:$0xff] %vm397, %v383
      %417 = vst.msk [vmem:[%s221 + $0x98] sm:$0xff] %vm397, %v384
      %418 = vst.msk [vmem:[%s221 + $0xa0] sm:$0xff] %vm397, %v385
      %419 = vst.msk [vmem:[%s221 + $0xa8] sm:$0xff] %vm397, %v386
      %420 = vst.msk [vmem:[%s221 + $0xb0] sm:$0xff] %vm397, %v387
      %421 = vst.msk [vmem:[%s221 + $0xb8] sm:$0xff] %vm397, %v388
      %422 = vst.msk [vmem:[%s221 + $0xc0] sm:$0xff] %vm397, %v389
      %423 = vst.msk [vmem:[%s221 + $0xc8] sm:$0xff] %vm397, %v390
      %424 = vst.msk [vmem:[%s221 + $0xd0] sm:$0xff] %vm397, %v391
      %425 = vst.msk [vmem:[%s221 + $0xd8] sm:$0xff] %vm397, %v392
      %426 = vst.msk [vmem:[%s221 + $0xe0] sm:$0xff] %vm397, %v393
      %427 = vst.msk [vmem:[%s221 + $0xe8] sm:$0xff] %vm397, %v394
      %428 = vst.msk [vmem:[%s221 + $0xf0] sm:$0xff] %vm397, %v395
      %429 = vst.msk [vmem:[%s221 + $0xf8] sm:$0xff] %vm397, %v396
      %s430 = smul.u32 32, %s15
      %p431 = scmp.lt.s32.totalorder %s430, 63
      %s432 = scalar_select %p431, %s430, 63
      %s433 = smul.addr %s432, 8
      %s434 = scalar_lea.vmem %s4, %s433
      // Predicated region
      $region37: #{edge_residual_forward.5} parent=35 // pred_check
        %p435 = pneg %p127
      $region38: #{edge_residual_forward.5} parent=35 // pred_check_branch
        %437 = sbr.rel (%p435) target = $region40
      $region39: #{edge_residual_forward.5} parent=35 // pred_region
        %s438 = smul.u32 32, %s15
      $region40: #{edge_residual_forward.5} parent=35 // pred_fallthru
        _
    $region36: #{edge_residual_forward.5} parent=5 // pred_fallthru
      _
    %p439 = scmp.le.s32.totalorder 2, %s10
    // Predicated region
    $region41: #{edge_residual_forward.5} parent=5 // pred_check
      %p440 = pneg %p439
    $region42: #{edge_residual_forward.5} parent=5 // pred_check_branch
      %442 = sbr.rel (%p440) target = $region44
    $region43: #{edge_residual_forward.5} parent=5 // pred_region
      %s443 = ssub.s32 %s10, 2
      // Predicated region
      $region45: #{edge_residual_forward.5} parent=43 // pred_check
        %p444 = pneg %p133
      $region46: #{edge_residual_forward.5} parent=43 // pred_check_branch
        %446 = sbr.rel (%p444) target = $region48
      $region47: #{edge_residual_forward.5} parent=43 // pred_region
        %s447 = smul.u32 32, %s16
        %p448 = scmp.lt.s32.totalorder %s447, 63
        %s449 = scalar_select %p448, %s447, 63
        %s450 = smul.addr %s449, 8
        %s451 = scalar_lea.vmem %s4, %s450
      $region48: #{edge_residual_forward.5} parent=43 // pred_fallthru
        _
    $region44: #{edge_residual_forward.5} parent=5 // pred_fallthru
      _
  $region6: #{edge_residual_forward.5} parent=0 // loop_footer
    %s14 = sadd.s32 1, %s10
  $region7: #{edge_residual_forward.5} parent=0 // loop_footer_branch
    %9 = sbr.rel target = $region3
  $region8: #{edge_residual_forward.5} parent=0 // loop_exit
    _

// kernel: edge_residual_forward.3
$region0: #{edge_residual_forward.3}
  #allocation0 [shape = 'u32[]', space=smem, size = 0x4, offset = 0x4, fixed_abs, tag = 'smem constant byte address 0x4 - core index']
  #allocation1 [shape = 'u32[144,128]{1,0:T(1,128)}', space=vmem, size = 0x12000, scoped, tag = 'internal scratch']
  %s0 = inlined_call_operand.vmem [shape: f32[2,18,18,4], index: 0, kind: input, shape index: {}]
  %s1 = inlined_call_operand.vmem [shape: f32[36,16], index: 1, kind: input, shape index: {}]
  %s2 = inlined_call_operand.vmem [shape: f32[2,16,16,16], index: 2, kind: output, shape index: {0}]
  %s3 = inlined_call_operand.vmem [shape: f32[4,8,16], index: 3, kind: output, shape index: {1}]
  %4 = xla_tuple %s2, %s3
  %s5 = sld [smem:[#allocation0]]
  $region49: #{edge_residual_forward.3} parent=0
    _
  %s7 = ssub.s32 1, %s5
  %s8 = scalar_select 0, %s7, %s5
  loop: start=0, step=1, limit=6
  $region2: #{edge_residual_forward.3} parent=0 // loop_pre_header
    _
  $region3: #{edge_residual_forward.3} parent=0 // loop_header
    %s10 = sphi 0, %s14
    %p11 = scmp.ge.s32.totalorder %s10, 6
    %s17 = sphi 0, %s29
    %s18 = sphi 0, %s25
    %s19 = sphi 0, %s17
    %s20 = sphi 0, %s18
    %s21 = sphi 0, %s19
    %s22 = sphi 0, %s20
    %s32 = sphi 0, %s34
    %s35 = sphi 0, %s32
    %s36 = sphi 0, %s35
    %s52 = sphi 0, %s36
    %s56 = sphi 0, %s56
    %s58 = sphi 0, %s56
    %s59 = sphi 0, %s58
    %s73 = sphi 0, %s59
    %s81 = sphi 0, %s83
    %s84 = sphi 0, %s81
    %s85 = sphi 0, %s84
    %s101 = sphi 0, %s85
    %s111 = sphi 0, %s113
    %s114 = sphi 0, %s111
    %s115 = sphi 0, %s114
    %s131 = sphi 0, %s115
  $region4: #{edge_residual_forward.3} parent=0 // loop_header_branch
    %13 = sbr.rel (%p11) target = $region8
  $region5: #{edge_residual_forward.3} parent=0 // loop_body
    %s15 = ssub.s32 %s10, 1
    %s16 = ssub.s32 %s10, 2
    %s23 = sadd.s32 1, %s18
    %p24 = scmp.ge.s32.totalorder %s23, 2
    %s25 = scalar_select %p24, 0, %s23
    %s26 = sadd.s32 1, %s17
    %s27 = scalar_select %p24, %s26, %s17
    %p28 = scmp.ge.s32.totalorder %s27, 2
    %s29 = scalar_select %p28, 0, %s27
    %s30 = ssub.s32 %s17, %s29
    %p31 = scmp.eq.s32.totalorder %s30, 0
    %s33 = sadd.s32 %s32, 1
    %s34 = scalar_select %p31, %s32, %s33
    %p37 = pneg %p31
    %p38 = scmp.eq.s32.totalorder %s10, 3
    %p39 = por %p37, %p38
    %p40 = scmp.ne.s32.totalorder %s32, %s35
    %p41 = scmp.eq.s32.totalorder %s10, 0
    %p42 = por %p40, %p41
    %p43 = scmp.ne.s32.totalorder %s32, %s35
    %p44 = scmp.eq.s32.totalorder %s15, 3
    %p45 = por %p43, %p44
    %p46 = scmp.ne.s32.totalorder %s35, %s36
    %p47 = scmp.eq.s32.totalorder %s15, 0
    %p48 = por %p46, %p47
    %p49 = scmp.ne.s32.totalorder %s35, %s36
    %p50 = scmp.eq.s32.totalorder %s16, 3
    %p51 = por %p49, %p50
    %p53 = scmp.ne.s32.totalorder %s36, %s52
    %p54 = scmp.eq.s32.totalorder %s16, 0
    %p55 = por %p53, %p54
    %s57 = sadd.s32 %s56, 1
    %p60 = scmp.eq.s32.totalorder %s10, 3
    %p61 = scmp.ne.s32.totalorder %s56, %s58
    %p62 = scmp.eq.s32.totalorder %s10, 0
    %p63 = por %p61, %p62
    %p64 = scmp.ne.s32.totalorder %s56, %s58
    %p65 = scmp.eq.s32.totalorder %s15, 3
    %p66 = por %p64, %p65
    %p67 = scmp.ne.s32.totalorder %s58, %s59
    %p68 = scmp.eq.s32.totalorder %s15, 0
    %p69 = por %p67, %p68
    %p70 = scmp.ne.s32.totalorder %s58, %s59
    %p71 = scmp.eq.s32.totalorder %s16, 3
    %p72 = por %p70, %p71
    %p74 = scmp.ne.s32.totalorder %s59, %s73
    %p75 = scmp.eq.s32.totalorder %s16, 0
    %p76 = por %p74, %p75
    %s77 = ssub.s32 %s17, %s29
    %s78 = ssub.s32 %s18, %s25
    %s79 = sor.u32 %s77, %s78
    %p80 = scmp.eq.s32.totalorder %s79, 0
    %s82 = sadd.s32 %s81, 1
    %s83 = scalar_select %p80, %s81, %s82
    %p86 = pneg %p80
    %p87 = scmp.eq.s32.totalorder %s10, 3
    %p88 = por %p86, %p87
    %p89 = scmp.ne.s32.totalorder %s81, %s84
    %p90 = scmp.eq.s32.totalorder %s10, 0
    %p91 = por %p89, %p90
    %p92 = scmp.ne.s32.totalorder %s81, %s84
    %p93 = scmp.eq.s32.totalorder %s15, 3
    %p94 = por %p92, %p93
    %p95 = scmp.ne.s32.totalorder %s84, %s85
    %p96 = scmp.eq.s32.totalorder %s15, 0
    %p97 = por %p95, %p96
    %p98 = scmp.ne.s32.totalorder %s84, %s85
    %p99 = scmp.eq.s32.totalorder %s16, 3
    %p100 = por %p98, %p99
    %p102 = scmp.ne.s32.totalorder %s85, %s101
    %p103 = scmp.eq.s32.totalorder %s16, 0
    %p104 = por %p102, %p103
    %s105 = smul.u32 %s17, 2
    %s106 = sadd.s32 %s105, %s18
    %s107 = smul.u32 %s29, 2
    %s108 = sadd.s32 %s107, %s25
    %s109 = ssub.s32 %s106, %s108
    %p110 = scmp.eq.s32.totalorder %s109, 0
    %s112 = sadd.s32 %s111, 1
    %s113 = scalar_select %p110, %s111, %s112
    %p116 = pneg %p110
    %p117 = scmp.eq.s32.totalorder %s10, 3
    %p118 = por %p116, %p117
    %p119 = scmp.ne.s32.totalorder %s111, %s114
    %p120 = scmp.eq.s32.totalorder %s10, 0
    %p121 = por %p119, %p120
    %p122 = scmp.ne.s32.totalorder %s111, %s114
    %p123 = scmp.eq.s32.totalorder %s15, 3
    %p124 = por %p122, %p123
    %p125 = scmp.ne.s32.totalorder %s114, %s115
    %p126 = scmp.eq.s32.totalorder %s15, 0
    %p127 = por %p125, %p126
    %p128 = scmp.ne.s32.totalorder %s114, %s115
    %p129 = scmp.eq.s32.totalorder %s16, 3
    %p130 = por %p128, %p129
    %p132 = scmp.ne.s32.totalorder %s115, %s131
    %p133 = scmp.eq.s32.totalorder %s16, 0
    %p134 = por %p132, %p133
    %p135 = scmp.le.s32.totalorder 1, %s10
    %p136 = scmp.lt.s32.totalorder %s10, 5
    %p137 = pnand %p135, %p136
    %p138 = pneg %p137
    // Predicated region
    $region9: #{edge_residual_forward.3} parent=5 // pred_check
      _
    $region10: #{edge_residual_forward.3} parent=5 // pred_check_branch
      %140 = sbr.rel (%p137) target = $region12
    $region11: #{edge_residual_forward.3} parent=5 // pred_region
      %s141 = ssub.s32 %s10, 1
      // Predicated region
      $region13: #{edge_residual_forward.3} parent=11 // pred_check
        %p142 = pneg %p69
      $region14: #{edge_residual_forward.3} parent=11 // pred_check_branch
        %144 = sbr.rel (%p142) target = $region16
      $region15: #{edge_residual_forward.3} parent=11 // pred_region
        _
      $region16: #{edge_residual_forward.3} parent=11 // pred_fallthru
        _
    $region12: #{edge_residual_forward.3} parent=5 // pred_fallthru
      _
    %p145 = scmp.lt.s32.totalorder %s10, 4
    // Predicated region
    $region17: #{edge_residual_forward.3} parent=5 // pred_check
      %p146 = pneg %p145
    $region18: #{edge_residual_forward.3} parent=5 // pred_check_branch
      %148 = sbr.rel (%p146) target = $region20
    $region19: #{edge_residual_forward.3} parent=5 // pred_region
      // Predicated region
      $region21: #{edge_residual_forward.3} parent=19 // pred_check
        %p149 = pneg %p42
      $region22: #{edge_residual_forward.3} parent=19 // pred_check_branch
        %151 = sbr.rel (%p149) target = $region24
      $region23: #{edge_residual_forward.3} parent=19 // pred_region
        %p152 = scmp.lt.s32.totalorder %s17, 1
        %s153 = scalar_select %p152, %s17, 1
        %s154 = smul.addr %s153, 54
        %s155 = smul.addr %s154, 8
        %s156 = scalar_lea.vmem %s0, %s155
      $region24: #{edge_residual_forward.3} parent=19 // pred_fallthru
        _
    $region20: #{edge_residual_forward.3} parent=5 // pred_fallthru
      _
    %p157 = scmp.le.s32.totalorder 1, %s10
    %p158 = scmp.lt.s32.totalorder %s10, 5
    %p159 = pnand %p157, %p158
    %p160 = pneg %p159
    // Predicated region
    $region25: #{edge_residual_forward.3} parent=5 // pred_check
      _
    $region26: #{edge_residual_forward.3} parent=5 // pred_check_branch
      %162 = sbr.rel (%p159) target = $region28
    $region27: #{edge_residual_forward.3} parent=5 // pred_region
      %s163 = ssub.s32 %s10, 1
      %p164 = scmp.lt.s32.totalorder %s19, 1
      %s165 = scalar_select %p164, %s19, 1
      %s166 = smul.addr %s165, 54
      %s167 = smul.addr %s166, 8
      %s168 = scalar_lea.vmem %s0, %s167
      %p169 = pneg %p48
      %p170 = pneg %p45
      %p171 = pneg %p69
      %p172 = pneg %p66
      %p173 = pneg %p97
      %p174 = pneg %p94
      %s175 = smul.u32 8, %s20
      %p176 = scmp.lt.s32.totalorder %s19, 1
      %s177 = scalar_select %p176, %s19, 1
      %p178 = scmp.lt.s32.totalorder %s175, 15
      %s179 = scalar_select %p178, %s175, 15
      %s180 = smul.addr %s179, 2
      %s181 = smul.addr %s177, 32
      %s182 = sadd.s32 %s180, %s181
      %s183 = smul.addr %s182, 8
      %s184 = scalar_lea.vmem %s2, %s183
      %p185 = pneg %p127
      %p186 = pneg %p124
      %s187 = smul.u32 %s19, 2
      %s188 = sadd.s32 %s187, %s20
      %p189 = scmp.lt.s32.totalorder %s188, 3
      %s190 = scalar_select %p189, %s188, 3
      %s191 = smul.addr %s190, 8
      %s192 = scalar_lea.vmem %s3, %s191
      %p193 = scmp.lt.s32.totalorder %s19, 1
      %s194 = scalar_select %p193, %s19, 1
      %s195 = smul.addr %s194, 54
      %s196 = smul.addr %s195, 8
      %s197 = scalar_lea.vmem %s0, %s196
      %s198 = smul.u32 8, %s20
      %p199 = scmp.lt.s32.totalorder %s19, 1
      %s200 = scalar_select %p199, %s19, 1
      %p201 = scmp.lt.s32.totalorder %s198, 15
      %s202 = scalar_select %p201, %s198, 15
      %s203 = smul.addr %s202, 2
      %s204 = smul.addr %s200, 32
      %s205 = sadd.s32 %s203, %s204
      %s206 = smul.addr %s205, 8
      %s207 = scalar_lea.vmem %s2, %s206
      %s208 = smul.u32 8, %s20
      %s209 = smul.u32 %s19, 2
      %s210 = sadd.s32 %s209, %s20
      %p211 = scmp.lt.s32.totalorder %s210, 3
      %s212 = scalar_select %p211, %s210, 3
      %s213 = smul.addr %s212, 8
      %s214 = scalar_lea.vmem %s3, %s213
      %s215 = smul.u32 %s19, 2
      %s216 = sadd.s32 %s215, %s20
      %s217 = smul.u32 %s20, 8
      %s218 = smul.u32 %s217, 24
      %s219 = scalar_lea.vmem %s197, %s218
      %v220 = vld [vmem:[%s219] sm:$0xff]
      %v221 = vld [vmem:[%s219 + $0x8] sm:$0xff]
      %v222 = vld [vmem:[%s219 + $0x10] sm:$0x3]
      %v223 = vld [vmem:[%s219 + $0x18] sm:$0xff]
      %v224 = vld [vmem:[%s219 + $0x20] sm:$0xff]
      %v225 = vld [vmem:[%s219 + $0x28] sm:$0x3]
      %v226 = vld [vmem:[%s219 + $0x30] sm:$0xff]
      %v227 = vld [vmem:[%s219 + $0x38] sm:$0xff]
      %v228 = vld [vmem:[%s219 + $0x40] sm:$0x3]
      %v229 = vld [vmem:[%s219 + $0x48] sm:$0xff]
      %v230 = vld [vmem:[%s219 + $0x50] sm:$0xff]
      %v231 = vld [vmem:[%s219 + $0x58] sm:$0x3]
      %v232 = vld [vmem:[%s219 + $0x60] sm:$0xff]
      %v233 = vld [vmem:[%s219 + $0x68] sm:$0xff]
      %v234 = vld [vmem:[%s219 + $0x70] sm:$0x3]
      %v235 = vld [vmem:[%s219 + $0x78] sm:$0xff]
      %v236 = vld [vmem:[%s219 + $0x80] sm:$0xff]
      %v237 = vld [vmem:[%s219 + $0x88] sm:$0x3]
      %v238 = vld [vmem:[%s219 + $0x90] sm:$0xff]
      %v239 = vld [vmem:[%s219 + $0x98] sm:$0xff]
      %v240 = vld [vmem:[%s219 + $0xa0] sm:$0x3]
      %v241 = vld [vmem:[%s219 + $0xa8] sm:$0xff]
      %v242 = vld [vmem:[%s219 + $0xb0] sm:$0xff]
      %v243 = vld [vmem:[%s219 + $0xb8] sm:$0x3]
      %v244 = vld [vmem:[%s219 + $0xc0] sm:$0xff]
      %v245 = vld [vmem:[%s219 + $0xc8] sm:$0xff]
      %v246 = vld [vmem:[%s219 + $0xd0] sm:$0x3]
      %v247 = vld [vmem:[%s219 + $0xd8] sm:$0xff]
      %v248 = vld [vmem:[%s219 + $0xe0] sm:$0xff]
      %v249 = vld [vmem:[%s219 + $0xe8] sm:$0x3]
      %vm274 = vcmask 1046528
      %v275 = vrot.slane %v220, 1
      %v276 = vrot.slane %v221, 1
      %v277 = vsel %vm274, %v275, %v276
      %v278 = vrot.slane %v222, 1
      %v279 = vsel %vm274, %v276, %v278
      %v280 = vrot.slane %v223, 1
      %v281 = vrot.slane %v224, 1
      %v282 = vsel %vm274, %v280, %v281
      %v283 = vrot.slane %v225, 1
      %v284 = vsel %vm274, %v281, %v283
      %v285 = vrot.slane %v226, 1
      %v286 = vrot.slane %v227, 1
      %v287 = vsel %vm274, %v285, %v286
      %v288 = vrot.slane %v228, 1
      %v289 = vsel %vm274, %v286, %v288
      %v290 = vrot.slane %v229, 1
      %v291 = vrot.slane %v230, 1
      %v292 = vsel %vm274, %v290, %v291
      %v293 = vrot.slane %v231, 1
      %v294 = vsel %vm274, %v291, %v293
      %v295 = vrot.slane %v232, 1
      %v296 = vrot.slane %v233, 1
      %v297 = vsel %vm274, %v295, %v296
      %v298 = vrot.slane %v234, 1
      %v299 = vsel %vm274, %v296, %v298
      %v300 = vrot.slane %v235, 1
      %v301 = vrot.slane %v236, 1
      %v302 = vsel %vm274, %v300, %v301
      %v303 = vrot.slane %v237, 1
      %v304 = vsel %vm274, %v301, %v303
      %v305 = vrot.slane %v238, 1
      %v306 = vrot.slane %v239, 1
      %v307 = vsel %vm274, %v305, %v306
      %v308 = vrot.slane %v240, 1
      %v309 = vsel %vm274, %v306, %v308
      %v310 = vrot.slane %v241, 1
      %v311 = vrot.slane %v242, 1
      %v312 = vsel %vm274, %v310, %v311
      %v313 = vrot.slane %v243, 1
      %v314 = vsel %vm274, %v311, %v313
      %315 = vrot.lane.b32.xlu0 %v277, 4
      %v316 = vpop.permute.xlu0 %315
      %317 = vrot.lane.b32.xlu0 %v279, 4
      %v318 = vpop.permute.xlu0 %317
      %319 = vrot.lane.b32.xlu0 %v282, 4
      %v320 = vpop.permute.xlu0 %319
      %321 = vrot.lane.b32.xlu0 %v284, 4
      %v322 = vpop.permute.xlu0 %321
      %323 = vrot.lane.b32.xlu0 %v287, 4
      %v324 = vpop.permute.xlu0 %323
      %325 = vrot.lane.b32.xlu0 %v289, 4
      %v326 = vpop.permute.xlu0 %325
      %327 = vrot.lane.b32.xlu0 %v292, 4
      %v328 = vpop.permute.xlu0 %327
      %329 = vrot.lane.b32.xlu0 %v294, 4
      %v330 = vpop.permute.xlu0 %329
      %331 = vrot.lane.b32.xlu0 %v297, 4
      %v332 = vpop.permute.xlu0 %331
      %333 = vrot.lane.b32.xlu0 %v299, 4
      %v334 = vpop.permute.xlu0 %333
      %335 = vrot.lane.b32.xlu0 %v302, 4
      %v336 = vpop.permute.xlu0 %335
      %337 = vrot.lane.b32.xlu0 %v304, 4
      %v338 = vpop.permute.xlu0 %337
      %339 = vrot.lane.b32.xlu0 %v307, 4
      %v340 = vpop.permute.xlu0 %339
      %341 = vrot.lane.b32.xlu0 %v309, 4
      %v342 = vpop.permute.xlu0 %341
      %343 = vrot.lane.b32.xlu0 %v312, 4
      %v344 = vpop.permute.xlu0 %343
      %345 = vrot.lane.b32.xlu0 %v314, 4
      %v346 = vpop.permute.xlu0 %345
      %vm363 = vcmask 1045504
      %v364 = vrot.slane %v220, 2
      %v365 = vrot.slane %v221, 2
      %v366 = vsel %vm363, %v364, %v365
      %v367 = vrot.slane %v222, 2
      %v368 = vsel %vm363, %v365, %v367
      %v369 = vrot.slane %v223, 2
      %v370 = vrot.slane %v224, 2
      %v371 = vsel %vm363, %v369, %v370
      %v372 = vrot.slane %v225, 2
      %v373 = vsel %vm363, %v370, %v372
      %v374 = vrot.slane %v226, 2
      %v375 = vrot.slane %v227, 2
      %v376 = vsel %vm363, %v374, %v375
      %v377 = vrot.slane %v228, 2
      %v378 = vsel %vm363, %v375, %v377
      %v379 = vrot.slane %v229, 2
      %v380 = vrot.slane %v230, 2
      %v381 = vsel %vm363, %v379, %v380
      %v382 = vrot.slane %v231, 2
      %v383 = vsel %vm363, %v380, %v382
      %v384 = vrot.slane %v232, 2
      %v385 = vrot.slane %v233, 2
      %v386 = vsel %vm363, %v384, %v385
      %v387 = vrot.slane %v234, 2
      %v388 = vsel %vm363, %v385, %v387
      %v389 = vrot.slane %v235, 2
      %v390 = vrot.slane %v236, 2
      %v391 = vsel %vm363, %v389, %v390
      %v392 = vrot.slane %v237, 2
      %v393 = vsel %vm363, %v390, %v392
      %v394 = vrot.slane %v238, 2
      %v395 = vrot.slane %v239, 2
      %v396 = vsel %vm363, %v394, %v395
      %v397 = vrot.slane %v240, 2
      %v398 = vsel %vm363, %v395, %v397
      %v399 = vrot.slane %v241, 2
      %v400 = vrot.slane %v242, 2
      %v401 = vsel %vm363, %v399, %v400
      %v402 = vrot.slane %v243, 2
      %v403 = vsel %vm363, %v400, %v402
      %404 = vrot.lane.b32.xlu0 %v366, 8
      %v405 = vpop.permute.xlu0 %404
      %406 = vrot.lane.b32.xlu0 %v368, 8
      %v407 = vpop.permute.xlu0 %406
      %408 = vrot.lane.b32.xlu0 %v371, 8
      %v409 = vpop.permute.xlu0 %408
      %410 = vrot.lane.b32.xlu0 %v373, 8
      %v411 = vpop.permute.xlu0 %410
      %412 = vrot.lane.b32.xlu0 %v376, 8
      %v413 = vpop.permute.xlu0 %412
      %414 = vrot.lane.b32.xlu0 %v378, 8
      %v415 = vpop.permute.xlu0 %414
      %416 = vrot.lane.b32.xlu0 %v381, 8
      %v417 = vpop.permute.xlu0 %416
      %418 = vrot.lane.b32.xlu0 %v383, 8
      %v419 = vpop.permute.xlu0 %418
      %420 = vrot.lane.b32.xlu0 %v386, 8
      %v421 = vpop.permute.xlu0 %420
      %422 = vrot.lane.b32.xlu0 %v388, 8
      %v423 = vpop.permute.xlu0 %422
      %424 = vrot.lane.b32.xlu0 %v391, 8
      %v425 = vpop.permute.xlu0 %424
      %426 = vrot.lane.b32.xlu0 %v393, 8
      %v427 = vpop.permute.xlu0 %426
      %428 = vrot.lane.b32.xlu0 %v396, 8
      %v429 = vpop.permute.xlu0 %428
      %430 = vrot.lane.b32.xlu0 %v398, 8
      %v431 = vpop.permute.xlu0 %430
      %432 = vrot.lane.b32.xlu0 %v401, 8
      %v433 = vpop.permute.xlu0 %432
      %434 = vrot.lane.b32.xlu0 %v403, 8
      %v435 = vpop.permute.xlu0 %434
      %454 = vrot.lane.b32.xlu0 %v223, 12
      %v455 = vpop.permute.xlu0 %454
      %456 = vrot.lane.b32.xlu0 %v224, 12
      %v457 = vpop.permute.xlu0 %456
      %458 = vrot.lane.b32.xlu0 %v226, 12
      %v459 = vpop.permute.xlu0 %458
      %460 = vrot.lane.b32.xlu0 %v227, 12
      %v461 = vpop.permute.xlu0 %460
      %462 = vrot.lane.b32.xlu0 %v229, 12
      %v463 = vpop.permute.xlu0 %462
      %464 = vrot.lane.b32.xlu0 %v230, 12
      %v465 = vpop.permute.xlu0 %464
      %466 = vrot.lane.b32.xlu0 %v232, 12
      %v467 = vpop.permute.xlu0 %466
      %468 = vrot.lane.b32.xlu0 %v233, 12
      %v469 = vpop.permute.xlu0 %468
      %470 = vrot.lane.b32.xlu0 %v235, 12
      %v471 = vpop.permute.xlu0 %470
      %472 = vrot.lane.b32.xlu0 %v236, 12
      %v473 = vpop.permute.xlu0 %472
      %474 = vrot.lane.b32.xlu0 %v238, 12
      %v475 = vpop.permute.xlu0 %474
      %476 = vrot.lane.b32.xlu0 %v239, 12
      %v477 = vpop.permute.xlu0 %476
      %478 = vrot.lane.b32.xlu0 %v241, 12
      %v479 = vpop.permute.xlu0 %478
      %480 = vrot.lane.b32.xlu0 %v242, 12
      %v481 = vpop.permute.xlu0 %480
      %482 = vrot.lane.b32.xlu0 %v244, 12
      %v483 = vpop.permute.xlu0 %482
      %484 = vrot.lane.b32.xlu0 %v245, 12
      %v485 = vpop.permute.xlu0 %484
      %v503 = vrot.slane %v244, 1
      %v504 = vrot.slane %v245, 1
      %v505 = vsel %vm274, %v503, %v504
      %v506 = vrot.slane %v246, 1
      %v507 = vsel %vm274, %v504, %v506
      %508 = vrot.lane.b32.xlu0 %v282, 16
      %v509 = vpop.permute.xlu0 %508
      %510 = vrot.lane.b32.xlu0 %v284, 16
      %v511 = vpop.permute.xlu0 %510
      %512 = vrot.lane.b32.xlu0 %v287, 16
      %v513 = vpop.permute.xlu0 %512
      %514 = vrot.lane.b32.xlu0 %v289, 16
      %v515 = vpop.permute.xlu0 %514
      %516 = vrot.lane.b32.xlu0 %v292, 16
      %v517 = vpop.permute.xlu0 %516
      %518 = vrot.lane.b32.xlu0 %v294, 16
      %v519 = vpop.permute.xlu0 %518
      %520 = vrot.lane.b32.xlu0 %v297, 16
      %v521 = vpop.permute.xlu0 %520
      %522 = vrot.lane.b32.xlu0 %v299, 16
      %v523 = vpop.permute.xlu0 %522
      %524 = vrot.lane.b32.xlu0 %v302, 16
      %v525 = vpop.permute.xlu0 %524
      %526 = vrot.lane.b32.xlu0 %v304, 16
      %v527 = vpop.permute.xlu0 %526
      %528 = vrot.lane.b32.xlu0 %v307, 16
      %v529 = vpop.permute.xlu0 %528
      %530 = vrot.lane.b32.xlu0 %v309, 16
      %v531 = vpop.permute.xlu0 %530
      %532 = vrot.lane.b32.xlu0 %v312, 16
      %v533 = vpop.permute.xlu0 %532
      %534 = vrot.lane.b32.xlu0 %v314, 16
      %v535 = vpop.permute.xlu0 %534
      %536 = vrot.lane.b32.xlu0 %v505, 16
      %v537 = vpop.permute.xlu0 %536
      %538 = vrot.lane.b32.xlu0 %v507, 16
      %v539 = vpop.permute.xlu0 %538
      %v556 = vrot.slane %v244, 2
      %v557 = vrot.slane %v245, 2
      %v558 = vsel %vm363, %v556, %v557
      %v559 = vrot.slane %v246, 2
      %v560 = vsel %vm363, %v557, %v559
      %561 = vrot.lane.b32.xlu0 %v371, 20
      %v562 = vpop.permute.xlu0 %561
      %563 = vrot.lane.b32.xlu0 %v373, 20
      %v564 = vpop.permute.xlu0 %563
      %565 = vrot.lane.b32.xlu0 %v376, 20
      %v566 = vpop.permute.xlu0 %565
      %567 = vrot.lane.b32.xlu0 %v378, 20
      %v568 = vpop.permute.xlu0 %567
      %569 = vrot.lane.b32.xlu0 %v381, 20
      %v570 = vpop.permute.xlu0 %569
      %571 = vrot.lane.b32.xlu0 %v383, 20
      %v572 = vpop.permute.xlu0 %571
      %573 = vrot.lane.b32.xlu0 %v386, 20
      %v574 = vpop.permute.xlu0 %573
      %575 = vrot.lane.b32.xlu0 %v388, 20
      %v576 = vpop.permute.xlu0 %575
      %577 = vrot.lane.b32.xlu0 %v391, 20
      %v578 = vpop.permute.xlu0 %577
      %579 = vrot.lane.b32.xlu0 %v393, 20
      %v580 = vpop.permute.xlu0 %579
      %581 = vrot.lane.b32.xlu0 %v396, 20
      %v582 = vpop.permute.xlu0 %581
      %583 = vrot.lane.b32.xlu0 %v398, 20
      %v584 = vpop.permute.xlu0 %583
      %585 = vrot.lane.b32.xlu0 %v401, 20
      %v586 = vpop.permute.xlu0 %585
      %587 = vrot.lane.b32.xlu0 %v403, 20
      %v588 = vpop.permute.xlu0 %587
      %589 = vrot.lane.b32.xlu0 %v558, 20
      %v590 = vpop.permute.xlu0 %589
      %591 = vrot.lane.b32.xlu0 %v560, 20
      %v592 = vpop.permute.xlu0 %591
      %611 = vrot.lane.b32.xlu0 %v226, 24
      %v612 = vpop.permute.xlu0 %611
      %613 = vrot.lane.b32.xlu0 %v227, 24
      %v614 = vpop.permute.xlu0 %613
      %615 = vrot.lane.b32.xlu0 %v229, 24
      %v616 = vpop.permute.xlu0 %615
      %617 = vrot.lane.b32.xlu0 %v230, 24
      %v618 = vpop.permute.xlu0 %617
      %619 = vrot.lane.b32.xlu0 %v232, 24
      %v620 = vpop.permute.xlu0 %619
      %621 = vrot.lane.b32.xlu0 %v233, 24
      %v622 = vpop.permute.xlu0 %621
      %623 = vrot.lane.b32.xlu0 %v235, 24
      %v624 = vpop.permute.xlu0 %623
      %625 = vrot.lane.b32.xlu0 %v236, 24
      %v626 = vpop.permute.xlu0 %625
      %627 = vrot.lane.b32.xlu0 %v238, 24
      %v628 = vpop.permute.xlu0 %627
      %629 = vrot.lane.b32.xlu0 %v239, 24
      %v630 = vpop.permute.xlu0 %629
      %631 = vrot.lane.b32.xlu0 %v241, 24
      %v632 = vpop.permute.xlu0 %631
      %633 = vrot.lane.b32.xlu0 %v242, 24
      %v634 = vpop.permute.xlu0 %633
      %635 = vrot.lane.b32.xlu0 %v244, 24
      %v636 = vpop.permute.xlu0 %635
      %637 = vrot.lane.b32.xlu0 %v245, 24
      %v638 = vpop.permute.xlu0 %637
      %639 = vrot.lane.b32.xlu0 %v247, 24
      %v640 = vpop.permute.xlu0 %639
      %641 = vrot.lane.b32.xlu0 %v248, 24
      %v642 = vpop.permute.xlu0 %641
      %v660 = vrot.slane %v247, 1
      %v661 = vrot.slane %v248, 1
      %v662 = vsel %vm274, %v660, %v661
      %v663 = vrot.slane %v249, 1
      %v664 = vsel %vm274, %v661, %v663
      %665 = vrot.lane.b32.xlu0 %v287, 28
      %v666 = vpop.permute.xlu0 %665
      %667 = vrot.lane.b32.xlu0 %v289, 28
      %v668 = vpop.permute.xlu0 %667
      %669 = vrot.lane.b32.xlu0 %v292, 28
      %v670 = vpop.permute.xlu0 %669
      %671 = vrot.lane.b32.xlu0 %v294, 28
      %v672 = vpop.permute.xlu0 %671
      %673 = vrot.lane.b32.xlu0 %v297, 28
      %v674 = vpop.permute.xlu0 %673
      %675 = vrot.lane.b32.xlu0 %v299, 28
      %v676 = vpop.permute.xlu0 %675
      %677 = vrot.lane.b32.xlu0 %v302, 28
      %v678 = vpop.permute.xlu0 %677
      %679 = vrot.lane.b32.xlu0 %v304, 28
      %v680 = vpop.permute.xlu0 %679
      %681 = vrot.lane.b32.xlu0 %v307, 28
      %v682 = vpop.permute.xlu0 %681
      %683 = vrot.lane.b32.xlu0 %v309, 28
      %v684 = vpop.permute.xlu0 %683
      %685 = vrot.lane.b32.xlu0 %v312, 28
      %v686 = vpop.permute.xlu0 %685
      %687 = vrot.lane.b32.xlu0 %v314, 28
      %v688 = vpop.permute.xlu0 %687
      %689 = vrot.lane.b32.xlu0 %v505, 28
      %v690 = vpop.permute.xlu0 %689
      %691 = vrot.lane.b32.xlu0 %v507, 28
      %v692 = vpop.permute.xlu0 %691
      %693 = vrot.lane.b32.xlu0 %v662, 28
      %v694 = vpop.permute.xlu0 %693
      %695 = vrot.lane.b32.xlu0 %v664, 28
      %v696 = vpop.permute.xlu0 %695
      %v713 = vrot.slane %v247, 2
      %v714 = vrot.slane %v248, 2
      %v715 = vsel %vm363, %v713, %v714
      %v716 = vrot.slane %v249, 2
      %v717 = vsel %vm363, %v714, %v716
      %718 = vrot.lane.b32.xlu0 %v376, 32
      %v719 = vpop.permute.xlu0 %718
      %720 = vrot.lane.b32.xlu0 %v378, 32
      %v721 = vpop.permute.xlu0 %720
      %722 = vrot.lane.b32.xlu0 %v381, 32
      %v723 = vpop.permute.xlu0 %722
      %724 = vrot.lane.b32.xlu0 %v383, 32
      %v725 = vpop.permute.xlu0 %724
      %726 = vrot.lane.b32.xlu0 %v386, 32
      %v727 = vpop.permute.xlu0 %726
      %728 = vrot.lane.b32.xlu0 %v388, 32
      %v729 = vpop.permute.xlu0 %728
      %730 = vrot.lane.b32.xlu0 %v391, 32
      %v731 = vpop.permute.xlu0 %730
      %732 = vrot.lane.b32.xlu0 %v393, 32
      %v733 = vpop.permute.xlu0 %732
      %734 = vrot.lane.b32.xlu0 %v396, 32
      %v735 = vpop.permute.xlu0 %734
      %736 = vrot.lane.b32.xlu0 %v398, 32
      %v737 = vpop.permute.xlu0 %736
      %738 = vrot.lane.b32.xlu0 %v401, 32
      %v739 = vpop.permute.xlu0 %738
      %740 = vrot.lane.b32.xlu0 %v403, 32
      %v741 = vpop.permute.xlu0 %740
      %742 = vrot.lane.b32.xlu0 %v558, 32
      %v743 = vpop.permute.xlu0 %742
      %744 = vrot.lane.b32.xlu0 %v560, 32
      %v745 = vpop.permute.xlu0 %744
      %746 = vrot.lane.b32.xlu0 %v715, 32
      %v747 = vpop.permute.xlu0 %746
      %748 = vrot.lane.b32.xlu0 %v717, 32
      %v749 = vpop.permute.xlu0 %748
      %vm766 = vcmask 31744
      %v767 = vsel %vm766, %v220, %v316
      %v768 = vsel %vm766, %v221, %v318
      %v769 = vsel %vm766, %v223, %v320
      %v770 = vsel %vm766, %v224, %v322
      %v771 = vsel %vm766, %v226, %v324
      %v772 = vsel %vm766, %v227, %v326
      %v773 = vsel %vm766, %v229, %v328
      %v774 = vsel %vm766, %v230, %v330
      %v775 = vsel %vm766, %v232, %v332
      %v776 = vsel %vm766, %v233, %v334
      %v777 = vsel %vm766, %v235, %v336
      %v778 = vsel %vm766, %v236, %v338
      %v779 = vsel %vm766, %v238, %v340
      %v780 = vsel %vm766, %v239, %v342
      %v781 = vsel %vm766, %v241, %v344
      %v782 = vsel %vm766, %v242, %v346
      %vm783 = vcmask 64512
      %v784 = vsel %vm783, %v767, %v405
      %v785 = vsel %vm783, %v768, %v407
      %v786 = vsel %vm783, %v769, %v409
      %v787 = vsel %vm783, %v770, %v411
      %v788 = vsel %vm783, %v771, %v413
      %v789 = vsel %vm783, %v772, %v415
      %v790 = vsel %vm783, %v773, %v417
      %v791 = vsel %vm783, %v774, %v419
      %v792 = vsel %vm783, %v775, %v421
      %v793 = vsel %vm783, %v776, %v423
      %v794 = vsel %vm783, %v777, %v425
      %v795 = vsel %vm783, %v778, %v427
      %v796 = vsel %vm783, %v779, %v429
      %v797 = vsel %vm783, %v780, %v431
      %v798 = vsel %vm783, %v781, %v433
      %v799 = vsel %vm783, %v782, %v435
      %vm800 = vcmask 97280
      %v801 = vsel %vm800, %v784, %v455
      %v802 = vsel %vm800, %v785, %v457
      %v803 = vsel %vm800, %v786, %v459
      %v804 = vsel %vm800, %v787, %v461
      %v805 = vsel %vm800, %v788, %v463
      %v806 = vsel %vm800, %v789, %v465
      %v807 = vsel %vm800, %v790, %v467
      %v808 = vsel %vm800, %v791, %v469
      %v809 = vsel %vm800, %v792, %v471
      %v810 = vsel %vm800, %v793, %v473
      %v811 = vsel %vm800, %v794, %v475
      %v812 = vsel %vm800, %v795, %v477
      %v813 = vsel %vm800, %v796, %v479
      %v814 = vsel %vm800, %v797, %v481
      %v815 = vsel %vm800, %v798, %v483
      %v816 = vsel %vm800, %v799, %v485
      %vm817 = vcmask 130048
      %v818 = vsel %vm817, %v801, %v509
      %v819 = vsel %vm817, %v802, %v511
      %v820 = vsel %vm817, %v803, %v513
      %v821 = vsel %vm817, %v804, %v515
      %v822 = vsel %vm817, %v805, %v517
      %v823 = vsel %vm817, %v806, %v519
      %v824 = vsel %vm817, %v807, %v521
      %v825 = vsel %vm817, %v808, %v523
      %v826 = vsel %vm817, %v809, %v525
      %v827 = vsel %vm817, %v810, %v527
      %v828 = vsel %vm817, %v811, %v529
      %v829 = vsel %vm817, %v812, %v531
      %v830 = vsel %vm817, %v813, %v533
      %v831 = vsel %vm817, %v814, %v535
      %v832 = vsel %vm817, %v815, %v537
      %v833 = vsel %vm817, %v816, %v539
      %vm834 = vcmask 162816
      %v835 = vsel %vm834, %v818, %v562
      %v836 = vsel %vm834, %v819, %v564
      %v837 = vsel %vm834, %v820, %v566
      %v838 = vsel %vm834, %v821, %v568
      %v839 = vsel %vm834, %v822, %v570
      %v840 = vsel %vm834, %v823, %v572
      %v841 = vsel %vm834, %v824, %v574
      %v842 = vsel %vm834, %v825, %v576
      %v843 = vsel %vm834, %v826, %v578
      %v844 = vsel %vm834, %v827, %v580
      %v845 = vsel %vm834, %v828, %v582
      %v846 = vsel %vm834, %v829, %v584
      %v847 = vsel %vm834, %v830, %v586
      %v848 = vsel %vm834, %v831, %v588
      %v849 = vsel %vm834, %v832, %v590
      %v850 = vsel %vm834, %v833, %v592
      %vm851 = vcmask 195584
      %v852 = vsel %vm851, %v835, %v612
      %v853 = vsel %vm851, %v836, %v614
      %v854 = vsel %vm851, %v837, %v616
      %v855 = vsel %vm851, %v838, %v618
      %v856 = vsel %vm851, %v839, %v620
      %v857 = vsel %vm851, %v840, %v622
      %v858 = vsel %vm851, %v841, %v624
      %v859 = vsel %vm851, %v842, %v626
      %v860 = vsel %vm851, %v843, %v628
      %v861 = vsel %vm851, %v844, %v630
      %v862 = vsel %vm851, %v845, %v632
      %v863 = vsel %vm851, %v846, %v634
      %v864 = vsel %vm851, %v847, %v636
      %v865 = vsel %vm851, %v848, %v638
      %v866 = vsel %vm851, %v849, %v640
      %v867 = vsel %vm851, %v850, %v642
      %vm868 = vcmask 228352
      %v869 = vsel %vm868, %v852, %v666
      %v870 = vsel %vm868, %v853, %v668
      %v871 = vsel %vm868, %v854, %v670
      %v872 = vsel %vm868, %v855, %v672
      %v873 = vsel %vm868, %v856, %v674
      %v874 = vsel %vm868, %v857, %v676
      %v875 = vsel %vm868, %v858, %v678
      %v876 = vsel %vm868, %v859, %v680
      %v877 = vsel %vm868, %v860, %v682
      %v878 = vsel %vm868, %v861, %v684
      %v879 = vsel %vm868, %v862, %v686
      %v880 = vsel %vm868, %v863, %v688
      %v881 = vsel %vm868, %v864, %v690
      %v882 = vsel %vm868, %v865, %v692
      %v883 = vsel %vm868, %v866, %v694
      %v884 = vsel %vm868, %v867, %v696
      %vm885 = vcmask 261120
      %v886 = vsel %vm885, %v869, %v719
      %v887 = vsel %vm885, %v870, %v721
      %v888 = vsel %vm885, %v871, %v723
      %v889 = vsel %vm885, %v872, %v725
      %v890 = vsel %vm885, %v873, %v727
      %v891 = vsel %vm885, %v874, %v729
      %v892 = vsel %vm885, %v875, %v731
      %v893 = vsel %vm885, %v876, %v733
      %v894 = vsel %vm885, %v877, %v735
      %v895 = vsel %vm885, %v878, %v737
      %v896 = vsel %vm885, %v879, %v739
      %v897 = vsel %vm885, %v880, %v741
      %v898 = vsel %vm885, %v881, %v743
      %v899 = vsel %vm885, %v882, %v745
      %v900 = vsel %vm885, %v883, %v747
      %v901 = vsel %vm885, %v884, %v749
      %v902 = vld [vmem:[%s1] sm:$0xff]
      %v903 = vld [vmem:[%s1 + $0x8] sm:$0xff]
      %v904 = vld [vmem:[%s1 + $0x10] sm:$0xff]
      %v905 = vld [vmem:[%s1 + $0x18] sm:$0xff]
      %v906 = vld [vmem:[%s1 + $0x20] sm:$0xf]
      %vm907 = vcmask 293888
      %v909 = vsel %vm907, %v886, 0
      %v912 = vsel %vm907, %v887, 0
      %v915 = vsel %vm907, %v888, 0
      %v918 = vsel %vm907, %v889, 0
      %v921 = vsel %vm907, %v890, 0
      %v924 = vsel %vm907, %v891, 0
      %v927 = vsel %vm907, %v892, 0
      %v930 = vsel %vm907, %v893, 0
      %v933 = vsel %vm907, %v894, 0
      %v936 = vsel %vm907, %v895, 0
      %v939 = vsel %vm907, %v896, 0
      %v942 = vsel %vm907, %v897, 0
      %v945 = vsel %vm907, %v898, 0
      %v948 = vsel %vm907, %v899, 0
      %v951 = vsel %vm907, %v900, 0
      %v954 = vsel %vm907, %v901, 0
      %vm956 = vcmask 1043456
      %v958 = vsel %vm956, %v906, 0
      %960 = vmatprep.subr.mxu0 0.0
      %961 = vmatpush1.msra.mxu0 %v902
      %962 = vmatprep.subr.mxu0 0.0
      %963 = vmatpush1.msra.mxu0 %v903
      %964 = vmatprep.subr.mxu0 0.0
      %965 = vmatpush1.msra.mxu0 %v904
      %966 = vmatprep.subr.mxu0 0.0
      %967 = vmatpush1.msra.mxu0 %v905
      %968 = vmatprep.subr.mxu0 0.0
      %969 = vmatpush1.msra.mxu0 %v958
      %970 = vmatprep.subr.mxu0 0.0
      %971 = vmatpush1.msra.mxu0 0.0
      %972 = vmatprep.subr.mxu0 0.0
      %973 = vmatpush1.msra.mxu0 0.0
      %974 = vmatprep.subr.mxu0 0.0
      %975 = vmatpush1.msra.mxu0 0.0
      %976 = vmatprep.subr.mxu0 0.0
      %977 = vmatpush1.msra.mxu0 0.0
      %978 = vmatprep.subr.mxu0 0.0
      %979 = vmatpush1.msra.mxu0 0.0
      %980 = vmatprep.subr.mxu0 0.0
      %981 = vmatpush1.msra.mxu0 0.0
      %982 = vmatprep.subr.mxu0 0.0
      %983 = vmatpush1.msra.mxu0 0.0
      %984 = vmatprep.subr.mxu0 0.0
      %985 = vmatpush1.msra.mxu0 0.0
      %986 = vmatprep.subr.mxu0 0.0
      %987 = vmatpush1.msra.mxu0 0.0
      %988 = vmatprep.subr.mxu0 0.0
      %989 = vmatpush1.msra.mxu0 0.0
      %990 = vmatprep.subr.mxu0 0.0
      %991 = vmatpush1.msra.mxu0 0.0
      %992 = vmatprep.subr.mxu0 0.0
      %993 = vmatpush1.msra.mxu0 0.0
      %994 = vmatprep.subr.mxu0 0.0
      %995 = vmatpush1.msra.mxu0 0.0
      %996 = vmatprep.subr.mxu0 0.0
      %997 = vmatpush1.msra.mxu0 0.0
      %998 = vmatprep.subr.mxu0 0.0
      %999 = vmatpush1.msra.mxu0 0.0
      %1000 = vmatprep.subr.mxu0 0.0
      %1001 = vmatpush1.msra.mxu0 0.0
      %1002 = vmatprep.subr.mxu0 0.0
      %1003 = vmatpush1.msra.mxu0 0.0
      %1004 = vmatprep.subr.mxu0 0.0
      %1005 = vmatpush1.msra.mxu0 0.0
      %1006 = vmatprep.subr.mxu0 0.0
      %1007 = vmatpush1.msra.mxu0 0.0
      %1008 = vmatprep.subr.mxu0 0.0
      %1009 = vmatpush1.msra.mxu0 0.0
      %1010 = vmatprep.subr.mxu0 0.0
      %1011 = vmatpush1.msra.mxu0 0.0
      %1012 = vmatprep.subr.mxu0 0.0
      %1013 = vmatpush1.msra.mxu0 0.0
      %1014 = vmatprep.subr.mxu0 0.0
      %1015 = vmatpush1.msra.mxu0 0.0
      %1016 = vmatprep.subr.mxu0 0.0
      %1017 = vmatpush1.msra.mxu0 0.0
      %1018 = vmatprep.subr.mxu0 0.0
      %1019 = vmatpush1.msra.mxu0 0.0
      %1020 = vmatprep.subr.mxu0 0.0
      %1021 = vmatpush1.msra.mxu0 0.0
      %1022 = vmatprep.subr.mxu0 0.0
      %1023 = vmatpush1.msra.mxu0 0.0
      %1024 = vmatprep.mubr.f32.mxu0 0.0
      %1025 = vmatmul.mubr.f32.gmra.mrb[0].mxu0 %v909
      %v1026 = vpop.f32.mrb[0].mxu0
      %v1027 = vadd.f32 0.0, %v1026
      %v1028 = vpop.f32.mrb[0].mxu0
      %1029 = vmatprep.mubr.f32.mxu0 0.0
      %1030 = vmatmul.mubr.f32.gmra.mrb[0].mxu0 %v912
      %v1031 = vpop.f32.mrb[0].mxu0
      %v1032 = vadd.f32 0.0, %v1031
      %v1033 = vpop.f32.mrb[0].mxu0
      %1034 = vmatprep.mubr.f32.mxu0 0.0
      %1035 = vmatmul.mubr.f32.gmra.mrb[0].mxu0 %v915
      %v1036 = vpop.f32.mrb[0].mxu0
      %v1037 = vadd.f32 0.0, %v1036
      %v1038 = vpop.f32.mrb[0].mxu0
      %1039 = vmatprep.mubr.f32.mxu0 0.0
      %1040 = vmatmul.mubr.f32.gmra.mrb[0].mxu0 %v918
      %v1041 = vpop.f32.mrb[0].mxu0
      %v1042 = vadd.f32 0.0, %v1041
      %v1043 = vpop.f32.mrb[0].mxu0
      %1044 = vmatprep.mubr.f32.mxu0 0.0
      %1045 = vmatmul.mubr.f32.gmra.mrb[0].mxu0 %v921
      %v1046 = vpop.f32.mrb[0].mxu0
      %v1047 = vadd.f32 0.0, %v1046
      %v1048 = vpop.f32.mrb[0].mxu0
      %1049 = vmatprep.mubr.f32.mxu0 0.0
      %1050 = vmatmul.mubr.f32.gmra.mrb[0].mxu0 %v924
      %v1051 = vpop.f32.mrb[0].mxu0
      %v1052 = vadd.f32 0.0, %v1051
      %v1053 = vpop.f32.mrb[0].mxu0
      %1054 = vmatprep.mubr.f32.mxu0 0.0
      %1055 = vmatmul.mubr.f32.gmra.mrb[0].mxu0 %v927
      %v1056 = vpop.f32.mrb[0].mxu0
      %v1057 = vadd.f32 0.0, %v1056
      %v1058 = vpop.f32.mrb[0].mxu0
      %1059 = vmatprep.mubr.f32.mxu0 0.0
      %1060 = vmatmul.mubr.f32.gmra.mrb[0].mxu0 %v930
      %v1061 = vpop.f32.mrb[0].mxu0
      %v1062 = vadd.f32 0.0, %v1061
      %v1063 = vpop.f32.mrb[0].mxu0
      %1064 = vmatprep.mubr.f32.mxu0 0.0
      %1065 = vmatmul.mubr.f32.gmra.mrb[0].mxu0 %v933
      %v1066 = vpop.f32.mrb[0].mxu0
      %v1067 = vadd.f32 0.0, %v1066
      %v1068 = vpop.f32.mrb[0].mxu0
      %1069 = vmatprep.mubr.f32.mxu0 0.0
      %1070 = vmatmul.mubr.f32.gmra.mrb[0].mxu0 %v936
      %v1071 = vpop.f32.mrb[0].mxu0
      %v1072 = vadd.f32 0.0, %v1071
      %v1073 = vpop.f32.mrb[0].mxu0
      %1074 = vmatprep.mubr.f32.mxu0 0.0
      %1075 = vmatmul.mubr.f32.gmra.mrb[0].mxu0 %v939
      %v1076 = vpop.f32.mrb[0].mxu0
      %v1077 = vadd.f32 0.0, %v1076
      %v1078 = vpop.f32.mrb[0].mxu0
      %1079 = vmatprep.mubr.f32.mxu0 0.0
      %1080 = vmatmul.mubr.f32.gmra.mrb[0].mxu0 %v942
      %v1081 = vpop.f32.mrb[0].mxu0
      %v1082 = vadd.f32 0.0, %v1081
      %v1083 = vpop.f32.mrb[0].mxu0
      %1084 = vmatprep.mubr.f32.mxu0 0.0
      %1085 = vmatmul.mubr.f32.gmra.mrb[0].mxu0 %v945
      %v1086 = vpop.f32.mrb[0].mxu0
      %v1087 = vadd.f32 0.0, %v1086
      %v1088 = vpop.f32.mrb[0].mxu0
      %1089 = vmatprep.mubr.f32.mxu0 0.0
      %1090 = vmatmul.mubr.f32.gmra.mrb[0].mxu0 %v948
      %v1091 = vpop.f32.mrb[0].mxu0
      %v1092 = vadd.f32 0.0, %v1091
      %v1093 = vpop.f32.mrb[0].mxu0
      %1094 = vmatprep.mubr.f32.mxu0 0.0
      %1095 = vmatmul.mubr.f32.gmra.mrb[0].mxu0 %v951
      %v1096 = vpop.f32.mrb[0].mxu0
      %v1097 = vadd.f32 0.0, %v1096
      %v1098 = vpop.f32.mrb[0].mxu0
      %1099 = vmatprep.mubr.f32.mxu0 0.0
      %1100 = vmatmul.mubr.f32.gmra.mrb[0].mxu0 %v954
      %v1101 = vpop.f32.mrb[0].mxu0
      %v1102 = vadd.f32 0.0, %v1101
      %v1103 = vpop.f32.mrb[0].mxu0
      %1104 = vdwg.mxu0
      %1105 = vst.msk [vmem:[%s207] sm:$0xff] %vm817, %v1027
      %1106 = vst.msk [vmem:[%s207 + $0x8] sm:$0xff] %vm817, %v1032
      %1107 = vst.msk [vmem:[%s207 + $0x10] sm:$0xff] %vm817, %v1037
      %1108 = vst.msk [vmem:[%s207 + $0x18] sm:$0xff] %vm817, %v1042
      %1109 = vst.msk [vmem:[%s207 + $0x20] sm:$0xff] %vm817, %v1047
      %1110 = vst.msk [vmem:[%s207 + $0x28] sm:$0xff] %vm817, %v1052
      %1111 = vst.msk [vmem:[%s207 + $0x30] sm:$0xff] %vm817, %v1057
      %1112 = vst.msk [vmem:[%s207 + $0x38] sm:$0xff] %vm817, %v1062
      %1113 = vst.msk [vmem:[%s207 + $0x40] sm:$0xff] %vm817, %v1067
      %1114 = vst.msk [vmem:[%s207 + $0x48] sm:$0xff] %vm817, %v1072
      %1115 = vst.msk [vmem:[%s207 + $0x50] sm:$0xff] %vm817, %v1077
      %1116 = vst.msk [vmem:[%s207 + $0x58] sm:$0xff] %vm817, %v1082
      %1117 = vst.msk [vmem:[%s207 + $0x60] sm:$0xff] %vm817, %v1087
      %1118 = vst.msk [vmem:[%s207 + $0x68] sm:$0xff] %vm817, %v1092
      %1119 = vst.msk [vmem:[%s207 + $0x70] sm:$0xff] %vm817, %v1097
      %1120 = vst.msk [vmem:[%s207 + $0x78] sm:$0xff] %vm817, %v1102
      %v1121 = vsel %vm817, %v1027, 0.0
      %v1122 = vsel %vm817, %v1032, 0.0
      %v1123 = vadd.f32 %v1121, %v1122
      %v1124 = vsel %vm817, %v1037, 0.0
      %v1125 = vadd.f32 %v1123, %v1124
      %v1126 = vsel %vm817, %v1042, 0.0
      %v1127 = vadd.f32 %v1125, %v1126
      %v1128 = vsel %vm817, %v1047, 0.0
      %v1129 = vadd.f32 %v1127, %v1128
      %v1130 = vsel %vm817, %v1052, 0.0
      %v1131 = vadd.f32 %v1129, %v1130
      %v1132 = vsel %vm817, %v1057, 0.0
      %v1133 = vadd.f32 %v1131, %v1132
      %v1134 = vsel %vm817, %v1062, 0.0
      %v1135 = vadd.f32 %v1133, %v1134
      %v1136 = vsel %vm817, %v1067, 0.0
      %v1137 = vadd.f32 %v1135, %v1136
      %v1138 = vsel %vm817, %v1072, 0.0
      %v1139 = vadd.f32 %v1137, %v1138
      %v1140 = vsel %vm817, %v1077, 0.0
      %v1141 = vadd.f32 %v1139, %v1140
      %v1142 = vsel %vm817, %v1082, 0.0
      %v1143 = vadd.f32 %v1141, %v1142
      %v1144 = vsel %vm817, %v1087, 0.0
      %v1145 = vadd.f32 %v1143, %v1144
      %v1146 = vsel %vm817, %v1092, 0.0
      %v1147 = vadd.f32 %v1145, %v1146
      %v1148 = vsel %vm817, %v1097, 0.0
      %v1149 = vadd.f32 %v1147, %v1148
      %v1150 = vsel %vm817, %v1102, 0.0
      %v1151 = vadd.f32 %v1149, %v1150
      %v1152 = vrot.slane %v1151, 4
      %v1153 = vadd.f32 %v1151, %v1152
      %v1154 = vrot.slane %v1153, 2
      %v1155 = vadd.f32 %v1153, %v1154
      %v1156 = vrot.slane %v1155, 1
      %v1157 = vadd.f32 %v1155, %v1156
      %v1158 = vmul.f32 %v1027, %v1027
      %v1159 = vmul.f32 %v1032, %v1032
      %v1160 = vmul.f32 %v1037, %v1037
      %v1161 = vmul.f32 %v1042, %v1042
      %v1162 = vmul.f32 %v1047, %v1047
      %v1163 = vmul.f32 %v1052, %v1052
      %v1164 = vmul.f32 %v1057, %v1057
      %v1165 = vmul.f32 %v1062, %v1062
      %v1166 = vmul.f32 %v1067, %v1067
      %v1167 = vmul.f32 %v1072, %v1072
      %v1168 = vmul.f32 %v1077, %v1077
      %v1169 = vmul.f32 %v1082, %v1082
      %v1170 = vmul.f32 %v1087, %v1087
      %v1171 = vmul.f32 %v1092, %v1092
      %v1172 = vmul.f32 %v1097, %v1097
      %v1173 = vmul.f32 %v1102, %v1102
      %v1174 = vsel %vm817, %v1158, 0.0
      %v1175 = vsel %vm817, %v1159, 0.0
      %v1176 = vadd.f32 %v1174, %v1175
      %v1177 = vsel %vm817, %v1160, 0.0
      %v1178 = vadd.f32 %v1176, %v1177
      %v1179 = vsel %vm817, %v1161, 0.0
      %v1180 = vadd.f32 %v1178, %v1179
      %v1181 = vsel %vm817, %v1162, 0.0
      %v1182 = vadd.f32 %v1180, %v1181
      %v1183 = vsel %vm817, %v1163, 0.0
      %v1184 = vadd.f32 %v1182, %v1183
      %v1185 = vsel %vm817, %v1164, 0.0
      %v1186 = vadd.f32 %v1184, %v1185
      %v1187 = vsel %vm817, %v1165, 0.0
      %v1188 = vadd.f32 %v1186, %v1187
      %v1189 = vsel %vm817, %v1166, 0.0
      %v1190 = vadd.f32 %v1188, %v1189
      %v1191 = vsel %vm817, %v1167, 0.0
      %v1192 = vadd.f32 %v1190, %v1191
      %v1193 = vsel %vm817, %v1168, 0.0
      %v1194 = vadd.f32 %v1192, %v1193
      %v1195 = vsel %vm817, %v1169, 0.0
      %v1196 = vadd.f32 %v1194, %v1195
      %v1197 = vsel %vm817, %v1170, 0.0
      %v1198 = vadd.f32 %v1196, %v1197
      %v1199 = vsel %vm817, %v1171, 0.0
      %v1200 = vadd.f32 %v1198, %v1199
      %v1201 = vsel %vm817, %v1172, 0.0
      %v1202 = vadd.f32 %v1200, %v1201
      %v1203 = vsel %vm817, %v1173, 0.0
      %v1204 = vadd.f32 %v1202, %v1203
      %v1205 = vrot.slane %v1204, 4
      %v1206 = vadd.f32 %v1204, %v1205
      %v1207 = vrot.slane %v1206, 2
      %v1208 = vadd.f32 %v1206, %v1207
      %v1209 = vrot.slane %v1208, 1
      %v1210 = vadd.f32 %v1208, %v1209
      %vm1211 = vcmask 1040384
      %v1212 = vsel %vm1211, %v1157, %v1210
      %vm1213 = vcmask 1041408
      %v1214 = vsel %vm1213, %v1212, 0.0
      %1215 = vst.msk [vmem:[%s214] sm:$0xff] %vm817, %v1214
      %s1216 = smul.u32 8, %s20
      %p1217 = scmp.lt.s32.totalorder %s19, 1
      %s1218 = scalar_select %p1217, %s19, 1
      %p1219 = scmp.lt.s32.totalorder %s1216, 15
      %s1220 = scalar_select %p1219, %s1216, 15
      %s1221 = smul.addr %s1220, 2
      %s1222 = smul.addr %s1218, 32
      %s1223 = sadd.s32 %s1221, %s1222
      %s1224 = smul.addr %s1223, 8
      %s1225 = scalar_lea.vmem %s2, %s1224
      %s1226 = smul.u32 %s19, 2
      %s1227 = sadd.s32 %s1226, %s20
      %p1228 = scmp.lt.s32.totalorder %s1227, 3
      %s1229 = scalar_select %p1228, %s1227, 3
      %s1230 = smul.addr %s1229, 8
      %s1231 = scalar_lea.vmem %s3, %s1230
      // Predicated region
      $region29: #{edge_residual_forward.3} parent=27 // pred_check
        %p1232 = pneg %p94
      $region30: #{edge_residual_forward.3} parent=27 // pred_check_branch
        %1234 = sbr.rel (%p1232) target = $region32
      $region31: #{edge_residual_forward.3} parent=27 // pred_region
        %s1235 = smul.u32 8, %s20
      $region32: #{edge_residual_forward.3} parent=27 // pred_fallthru
        _
      // Predicated region
      $region33: #{edge_residual_forward.3} parent=27 // pred_check
        %p1236 = pneg %p124
      $region34: #{edge_residual_forward.3} parent=27 // pred_check_branch
        %1238 = sbr.rel (%p1236) target = $region36
      $region35: #{edge_residual_forward.3} parent=27 // pred_region
        %s1239 = smul.u32 %s19, 2
        %s1240 = sadd.s32 %s1239, %s20
      $region36: #{edge_residual_forward.3} parent=27 // pred_fallthru
        _
    $region28: #{edge_residual_forward.3} parent=5 // pred_fallthru
      _
    %p1241 = scmp.le.s32.totalorder 2, %s10
    // Predicated region
    $region37: #{edge_residual_forward.3} parent=5 // pred_check
      %p1242 = pneg %p1241
    $region38: #{edge_residual_forward.3} parent=5 // pred_check_branch
      %1244 = sbr.rel (%p1242) target = $region40
    $region39: #{edge_residual_forward.3} parent=5 // pred_region
      %s1245 = ssub.s32 %s10, 2
      // Predicated region
      $region41: #{edge_residual_forward.3} parent=39 // pred_check
        %p1246 = pneg %p100
      $region42: #{edge_residual_forward.3} parent=39 // pred_check_branch
        %1248 = sbr.rel (%p1246) target = $region44
      $region43: #{edge_residual_forward.3} parent=39 // pred_region
        %s1249 = smul.u32 8, %s22
        %p1250 = scmp.lt.s32.totalorder %s21, 1
        %s1251 = scalar_select %p1250, %s21, 1
        %p1252 = scmp.lt.s32.totalorder %s1249, 15
        %s1253 = scalar_select %p1252, %s1249, 15
        %s1254 = smul.addr %s1253, 2
        %s1255 = smul.addr %s1251, 32
        %s1256 = sadd.s32 %s1254, %s1255
        %s1257 = smul.addr %s1256, 8
        %s1258 = scalar_lea.vmem %s2, %s1257
      $region44: #{edge_residual_forward.3} parent=39 // pred_fallthru
        _
      // Predicated region
      $region45: #{edge_residual_forward.3} parent=39 // pred_check
        %p1259 = pneg %p130
      $region46: #{edge_residual_forward.3} parent=39 // pred_check_branch
        %1261 = sbr.rel (%p1259) target = $region48
      $region47: #{edge_residual_forward.3} parent=39 // pred_region
        %s1262 = smul.u32 %s21, 2
        %s1263 = sadd.s32 %s1262, %s22
        %p1264 = scmp.lt.s32.totalorder %s1263, 3
        %s1265 = scalar_select %p1264, %s1263, 3
        %s1266 = smul.addr %s1265, 8
        %s1267 = scalar_lea.vmem %s3, %s1266
      $region48: #{edge_residual_forward.3} parent=39 // pred_fallthru
        _
    $region40: #{edge_residual_forward.3} parent=5 // pred_fallthru
      _
  $region6: #{edge_residual_forward.3} parent=0 // loop_footer
    %s14 = sadd.s32 1, %s10
  $region7: #{edge_residual_forward.3} parent=0 // loop_footer_branch
    %9 = sbr.rel target = $region3
  $region8: #{edge_residual_forward.3} parent=0 // loop_exit
    _

// kernel: edge_residual_forward.4
$region0: #{edge_residual_forward.4}
  #allocation0 [shape = 'u32[]', space=smem, size = 0x4, offset = 0x4, fixed_abs, tag = 'smem constant byte address 0x4 - core index']
  #allocation1 [shape = 'u32[144,128]{1,0:T(1,128)}', space=vmem, size = 0x12000, scoped, tag = 'internal scratch']
  %s0 = inlined_call_operand.vmem [shape: f32[512,16], index: 0, kind: input, shape index: {}]
  %s1 = inlined_call_operand.vmem [shape: f32[1,16], index: 1, kind: input, shape index: {}]
  %s2 = inlined_call_operand.vmem [shape: f32[1,16], index: 2, kind: input, shape index: {}]
  %s3 = inlined_call_operand.vmem [shape: f32[16,4], index: 3, kind: input, shape index: {}]
  %s4 = inlined_call_operand.vmem [shape: f32[512,4], index: 4, kind: output, shape index: {0}]
  %s5 = inlined_call_operand.vmem [shape: f32[2,8,4], index: 5, kind: output, shape index: {1}]
  %6 = xla_tuple %s4, %s5
  %s7 = sld [smem:[#allocation0]]
  $region57: #{edge_residual_forward.4} parent=0
    _
  %s9 = ssub.s32 1, %s7
  %s10 = scalar_select 0, %s9, %s7
  loop: start=0, step=1, limit=4
  $region2: #{edge_residual_forward.4} parent=0 // loop_pre_header
    _
  $region3: #{edge_residual_forward.4} parent=0 // loop_header
    %s12 = sphi 0, %s16
    %p13 = scmp.ge.s32.totalorder %s12, 4
    %s22 = sphi 0, %s24
    %s25 = sphi 0, %s22
    %s26 = sphi 0, %s25
    %s42 = sphi 0, %s26
    %s46 = sphi 0, %s46
    %s48 = sphi 0, %s46
    %s49 = sphi 0, %s48
    %s63 = sphi 0, %s49
    %s67 = sphi 0, %s67
    %s69 = sphi 0, %s67
    %s70 = sphi 0, %s69
    %s84 = sphi 0, %s70
    %s88 = sphi 0, %s88
    %s90 = sphi 0, %s88
    %s91 = sphi 0, %s90
    %s105 = sphi 0, %s91
    %s111 = sphi 0, %s113
    %s114 = sphi 0, %s111
    %s115 = sphi 0, %s114
    %s131 = sphi 0, %s115
    %s137 = sphi 0, %s139
    %s140 = sphi 0, %s137
    %s141 = sphi 0, %s140
    %s157 = sphi 0, %s141
  $region4: #{edge_residual_forward.4} parent=0 // loop_header_branch
    %15 = sbr.rel (%p13) target = $region8
  $region5: #{edge_residual_forward.4} parent=0 // loop_body
    %s17 = ssub.s32 %s12, 1
    %s18 = ssub.s32 %s12, 2
    %s19 = sadd.s32 %s12, 1
    %s20 = ssub.s32 %s12, %s19
    %p21 = scmp.eq.s32.totalorder %s20, 0
    %s23 = sadd.s32 %s22, 1
    %s24 = scalar_select %p21, %s22, %s23
    %p27 = pneg %p21
    %p28 = scmp.eq.s32.totalorder %s12, 1
    %p29 = por %p27, %p28
    %p30 = scmp.ne.s32.totalorder %s22, %s25
    %p31 = scmp.eq.s32.totalorder %s12, 0
    %p32 = por %p30, %p31
    %p33 = scmp.ne.s32.totalorder %s22, %s25
    %p34 = scmp.eq.s32.totalorder %s17, 1
    %p35 = por %p33, %p34
    %p36 = scmp.ne.s32.totalorder %s25, %s26
    %p37 = scmp.eq.s32.totalorder %s17, 0
    %p38 = por %p36, %p37
    %p39 = scmp.ne.s32.totalorder %s25, %s26
    %p40 = scmp.eq.s32.totalorder %s18, 1
    %p41 = por %p39, %p40
    %p43 = scmp.ne.s32.totalorder %s26, %s42
    %p44 = scmp.eq.s32.totalorder %s18, 0
    %p45 = por %p43, %p44
    %s47 = sadd.s32 %s46, 1
    %p50 = scmp.eq.s32.totalorder %s12, 1
    %p51 = scmp.ne.s32.totalorder %s46, %s48
    %p52 = scmp.eq.s32.totalorder %s12, 0
    %p53 = por %p51, %p52
    %p54 = scmp.ne.s32.totalorder %s46, %s48
    %p55 = scmp.eq.s32.totalorder %s17, 1
    %p56 = por %p54, %p55
    %p57 = scmp.ne.s32.totalorder %s48, %s49
    %p58 = scmp.eq.s32.totalorder %s17, 0
    %p59 = por %p57, %p58
    %p60 = scmp.ne.s32.totalorder %s48, %s49
    %p61 = scmp.eq.s32.totalorder %s18, 1
    %p62 = por %p60, %p61
    %p64 = scmp.ne.s32.totalorder %s49, %s63
    %p65 = scmp.eq.s32.totalorder %s18, 0
    %p66 = por %p64, %p65
    %s68 = sadd.s32 %s67, 1
    %p71 = scmp.eq.s32.totalorder %s12, 1
    %p72 = scmp.ne.s32.totalorder %s67, %s69
    %p73 = scmp.eq.s32.totalorder %s12, 0
    %p74 = por %p72, %p73
    %p75 = scmp.ne.s32.totalorder %s67, %s69
    %p76 = scmp.eq.s32.totalorder %s17, 1
    %p77 = por %p75, %p76
    %p78 = scmp.ne.s32.totalorder %s69, %s70
    %p79 = scmp.eq.s32.totalorder %s17, 0
    %p80 = por %p78, %p79
    %p81 = scmp.ne.s32.totalorder %s69, %s70
    %p82 = scmp.eq.s32.totalorder %s18, 1
    %p83 = por %p81, %p82
    %p85 = scmp.ne.s32.totalorder %s70, %s84
    %p86 = scmp.eq.s32.totalorder %s18, 0
    %p87 = por %p85, %p86
    %s89 = sadd.s32 %s88, 1
    %p92 = scmp.eq.s32.totalorder %s12, 1
    %p93 = scmp.ne.s32.totalorder %s88, %s90
    %p94 = scmp.eq.s32.totalorder %s12, 0
    %p95 = por %p93, %p94
    %p96 = scmp.ne.s32.totalorder %s88, %s90
    %p97 = scmp.eq.s32.totalorder %s17, 1
    %p98 = por %p96, %p97
    %p99 = scmp.ne.s32.totalorder %s90, %s91
    %p100 = scmp.eq.s32.totalorder %s17, 0
    %p101 = por %p99, %p100
    %p102 = scmp.ne.s32.totalorder %s90, %s91
    %p103 = scmp.eq.s32.totalorder %s18, 1
    %p104 = por %p102, %p103
    %p106 = scmp.ne.s32.totalorder %s91, %s105
    %p107 = scmp.eq.s32.totalorder %s18, 0
    %p108 = por %p106, %p107
    %s109 = ssub.s32 %s12, %s19
    %p110 = scmp.eq.s32.totalorder %s109, 0
    %s112 = sadd.s32 %s111, 1
    %s113 = scalar_select %p110, %s111, %s112
    %p116 = pneg %p110
    %p117 = scmp.eq.s32.totalorder %s12, 1
    %p118 = por %p116, %p117
    %p119 = scmp.ne.s32.totalorder %s111, %s114
    %p120 = scmp.eq.s32.totalorder %s12, 0
    %p121 = por %p119, %p120
    %p122 = scmp.ne.s32.totalorder %s111, %s114
    %p123 = scmp.eq.s32.totalorder %s17, 1
    %p124 = por %p122, %p123
    %p125 = scmp.ne.s32.totalorder %s114, %s115
    %p126 = scmp.eq.s32.totalorder %s17, 0
    %p127 = por %p125, %p126
    %p128 = scmp.ne.s32.totalorder %s114, %s115
    %p129 = scmp.eq.s32.totalorder %s18, 1
    %p130 = por %p128, %p129
    %p132 = scmp.ne.s32.totalorder %s115, %s131
    %p133 = scmp.eq.s32.totalorder %s18, 0
    %p134 = por %p132, %p133
    %s135 = ssub.s32 %s12, %s19
    %p136 = scmp.eq.s32.totalorder %s135, 0
    %s138 = sadd.s32 %s137, 1
    %s139 = scalar_select %p136, %s137, %s138
    %p142 = pneg %p136
    %p143 = scmp.eq.s32.totalorder %s12, 1
    %p144 = por %p142, %p143
    %p145 = scmp.ne.s32.totalorder %s137, %s140
    %p146 = scmp.eq.s32.totalorder %s12, 0
    %p147 = por %p145, %p146
    %p148 = scmp.ne.s32.totalorder %s137, %s140
    %p149 = scmp.eq.s32.totalorder %s17, 1
    %p150 = por %p148, %p149
    %p151 = scmp.ne.s32.totalorder %s140, %s141
    %p152 = scmp.eq.s32.totalorder %s17, 0
    %p153 = por %p151, %p152
    %p154 = scmp.ne.s32.totalorder %s140, %s141
    %p155 = scmp.eq.s32.totalorder %s18, 1
    %p156 = por %p154, %p155
    %p158 = scmp.ne.s32.totalorder %s141, %s157
    %p159 = scmp.eq.s32.totalorder %s18, 0
    %p160 = por %p158, %p159
    %p161 = scmp.le.s32.totalorder 1, %s12
    %p162 = scmp.lt.s32.totalorder %s12, 3
    %p163 = pnand %p161, %p162
    %p164 = pneg %p163
    // Predicated region
    $region9: #{edge_residual_forward.4} parent=5 // pred_check
      _
    $region10: #{edge_residual_forward.4} parent=5 // pred_check_branch
      %166 = sbr.rel (%p163) target = $region12
    $region11: #{edge_residual_forward.4} parent=5 // pred_region
      %s167 = ssub.s32 %s12, 1
      // Predicated region
      $region13: #{edge_residual_forward.4} parent=11 // pred_check
        %p168 = pneg %p59
      $region14: #{edge_residual_forward.4} parent=11 // pred_check_branch
        %170 = sbr.rel (%p168) target = $region16
      $region15: #{edge_residual_forward.4} parent=11 // pred_region
        _
      $region16: #{edge_residual_forward.4} parent=11 // pred_fallthru
        _
      // Predicated region
      $region17: #{edge_residual_forward.4} parent=11 // pred_check
        %p171 = pneg %p80
      $region18: #{edge_residual_forward.4} parent=11 // pred_check_branch
        %173 = sbr.rel (%p171) target = $region20
      $region19: #{edge_residual_forward.4} parent=11 // pred_region
        _
      $region20: #{edge_residual_forward.4} parent=11 // pred_fallthru
        _
      // Predicated region
      $region21: #{edge_residual_forward.4} parent=11 // pred_check
        %p174 = pneg %p101
      $region22: #{edge_residual_forward.4} parent=11 // pred_check_branch
        %176 = sbr.rel (%p174) target = $region24
      $region23: #{edge_residual_forward.4} parent=11 // pred_region
        _
      $region24: #{edge_residual_forward.4} parent=11 // pred_fallthru
        _
    $region12: #{edge_residual_forward.4} parent=5 // pred_fallthru
      _
    %p177 = scmp.lt.s32.totalorder %s12, 2
    // Predicated region
    $region25: #{edge_residual_forward.4} parent=5 // pred_check
      %p178 = pneg %p177
    $region26: #{edge_residual_forward.4} parent=5 // pred_check_branch
      %180 = sbr.rel (%p178) target = $region28
    $region27: #{edge_residual_forward.4} parent=5 // pred_region
      // Predicated region
      $region29: #{edge_residual_forward.4} parent=27 // pred_check
        %p181 = pneg %p32
      $region30: #{edge_residual_forward.4} parent=27 // pred_check_branch
        %183 = sbr.rel (%p181) target = $region32
      $region31: #{edge_residual_forward.4} parent=27 // pred_region
        %s184 = smul.u32 32, %s12
        %p185 = scmp.lt.s32.totalorder %s184, 63
        %s186 = scalar_select %p185, %s184, 63
        %s187 = smul.addr %s186, 8
        %s188 = scalar_lea.vmem %s0, %s187
        %s189 = smul.u32 32, %s12
      $region32: #{edge_residual_forward.4} parent=27 // pred_fallthru
        _
    $region28: #{edge_residual_forward.4} parent=5 // pred_fallthru
      _
    %p190 = scmp.le.s32.totalorder 1, %s12
    %p191 = scmp.lt.s32.totalorder %s12, 3
    %p192 = pnand %p190, %p191
    %p193 = pneg %p192
    // Predicated region
    $region33: #{edge_residual_forward.4} parent=5 // pred_check
      _
    $region34: #{edge_residual_forward.4} parent=5 // pred_check_branch
      %195 = sbr.rel (%p192) target = $region36
    $region35: #{edge_residual_forward.4} parent=5 // pred_region
      %s196 = ssub.s32 %s12, 1
      %s197 = smul.u32 32, %s17
      %p198 = scmp.lt.s32.totalorder %s197, 63
      %s199 = scalar_select %p198, %s197, 63
      %s200 = smul.addr %s199, 8
      %s201 = scalar_lea.vmem %s0, %s200
      %p202 = pneg %p38
      %p203 = pneg %p35
      %p204 = pneg %p59
      %p205 = pneg %p56
      %p206 = pneg %p80
      %p207 = pneg %p77
      %p208 = pneg %p101
      %p209 = pneg %p98
      %p210 = pneg %p127
      %p211 = pneg %p124
      %s212 = smul.u32 32, %s17
      %p213 = scmp.lt.s32.totalorder %s212, 63
      %s214 = scalar_select %p213, %s212, 63
      %s215 = smul.addr %s214, 8
      %s216 = scalar_lea.vmem %s4, %s215
      %p217 = pneg %p153
      %p218 = pneg %p150
      %p219 = scmp.lt.s32.totalorder %s17, 1
      %s220 = scalar_select %p219, %s17, 1
      %s221 = smul.addr %s220, 8
      %s222 = scalar_lea.vmem %s5, %s221
      %s223 = smul.u32 32, %s17
      %p224 = scmp.lt.s32.totalorder %s223, 63
      %s225 = scalar_select %p224, %s223, 63
      %s226 = smul.addr %s225, 8
      %s227 = scalar_lea.vmem %s0, %s226
      %s228 = smul.u32 32, %s17
      %s229 = smul.u32 32, %s17
      %p230 = scmp.lt.s32.totalorder %s229, 63
      %s231 = scalar_select %p230, %s229, 63
      %s232 = smul.addr %s231, 8
      %s233 = scalar_lea.vmem %s4, %s232
      %s234 = smul.u32 32, %s17
      %p235 = scmp.lt.s32.totalorder %s17, 1
      %s236 = scalar_select %p235, %s17, 1
      %s237 = smul.addr %s236, 8
      %s238 = scalar_lea.vmem %s5, %s237
      %v239 = vld [vmem:[%s227] sm:$0xff]
      %v240 = vld [vmem:[%s227 + $0x8] sm:$0xff]
      %v241 = vld [vmem:[%s227 + $0x10] sm:$0xff]
      %v242 = vld [vmem:[%s227 + $0x18] sm:$0xff]
      %v243 = vld [vmem:[%s227 + $0x20] sm:$0xff]
      %v244 = vld [vmem:[%s227 + $0x28] sm:$0xff]
      %v245 = vld [vmem:[%s227 + $0x30] sm:$0xff]
      %v246 = vld [vmem:[%s227 + $0x38] sm:$0xff]
      %v247 = vld [vmem:[%s227 + $0x40] sm:$0xff]
      %v248 = vld [vmem:[%s227 + $0x48] sm:$0xff]
      %v249 = vld [vmem:[%s227 + $0x50] sm:$0xff]
      %v250 = vld [vmem:[%s227 + $0x58] sm:$0xff]
      %v251 = vld [vmem:[%s227 + $0x60] sm:$0xff]
      %v252 = vld [vmem:[%s227 + $0x68] sm:$0xff]
      %v253 = vld [vmem:[%s227 + $0x70] sm:$0xff]
      %v254 = vld [vmem:[%s227 + $0x78] sm:$0xff]
      %v255 = vld [vmem:[%s227 + $0x80] sm:$0xff]
      %v256 = vld [vmem:[%s227 + $0x88] sm:$0xff]
      %v257 = vld [vmem:[%s227 + $0x90] sm:$0xff]
      %v258 = vld [vmem:[%s227 + $0x98] sm:$0xff]
      %v259 = vld [vmem:[%s227 + $0xa0] sm:$0xff]
      %v260 = vld [vmem:[%s227 + $0xa8] sm:$0xff]
      %v261 = vld [vmem:[%s227 + $0xb0] sm:$0xff]
      %v262 = vld [vmem:[%s227 + $0xb8] sm:$0xff]
      %v263 = vld [vmem:[%s227 + $0xc0] sm:$0xff]
      %v264 = vld [vmem:[%s227 + $0xc8] sm:$0xff]
      %v265 = vld [vmem:[%s227 + $0xd0] sm:$0xff]
      %v266 = vld [vmem:[%s227 + $0xd8] sm:$0xff]
      %v267 = vld [vmem:[%s227 + $0xe0] sm:$0xff]
      %v268 = vld [vmem:[%s227 + $0xe8] sm:$0xff]
      %v269 = vld [vmem:[%s227 + $0xf0] sm:$0xff]
      %v270 = vld [vmem:[%s227 + $0xf8] sm:$0xff]
      %v271 = vld [vmem:[%s1] sm:$0x1]
      %v273 = vlaneseq
      %v274 = vshrl.u32 %v273, 7
      %v275 = vsub.s32 0, %v274
      %v276 = vrot.slane %v271, %v275
      %v278 = vmul.f32 %v239, %v276
      %v279 = vmul.f32 %v240, %v276
      %v280 = vmul.f32 %v241, %v276
      %v281 = vmul.f32 %v242, %v276
      %v282 = vmul.f32 %v243, %v276
      %v283 = vmul.f32 %v244, %v276
      %v284 = vmul.f32 %v245, %v276
      %v285 = vmul.f32 %v246, %v276
      %v286 = vmul.f32 %v247, %v276
      %v287 = vmul.f32 %v248, %v276
      %v288 = vmul.f32 %v249, %v276
      %v289 = vmul.f32 %v250, %v276
      %v290 = vmul.f32 %v251, %v276
      %v291 = vmul.f32 %v252, %v276
      %v292 = vmul.f32 %v253, %v276
      %v293 = vmul.f32 %v254, %v276
      %v294 = vmul.f32 %v255, %v276
      %v295 = vmul.f32 %v256, %v276
      %v296 = vmul.f32 %v257, %v276
      %v297 = vmul.f32 %v258, %v276
      %v298 = vmul.f32 %v259, %v276
      %v299 = vmul.f32 %v260, %v276
      %v300 = vmul.f32 %v261, %v276
      %v301 = vmul.f32 %v262, %v276
      %v302 = vmul.f32 %v263, %v276
      %v303 = vmul.f32 %v264, %v276
      %v304 = vmul.f32 %v265, %v276
      %v305 = vmul.f32 %v266, %v276
      %v306 = vmul.f32 %v267, %v276
      %v307 = vmul.f32 %v268, %v276
      %v308 = vmul.f32 %v269, %v276
      %v309 = vmul.f32 %v270, %v276
      %v310 = vld [vmem:[%s2] sm:$0x1]
      %v312 = vlaneseq
      %v313 = vshrl.u32 %v312, 7
      %v314 = vsub.s32 0, %v313
      %v315 = vrot.slane %v310, %v314
      %v317 = vadd.f32 %v278, %v315
      %v318 = vadd.f32 %v279, %v315
      %v319 = vadd.f32 %v280, %v315
      %v320 = vadd.f32 %v281, %v315
      %v321 = vadd.f32 %v282, %v315
      %v322 = vadd.f32 %v283, %v315
      %v323 = vadd.f32 %v284, %v315
      %v324 = vadd.f32 %v285, %v315
      %v325 = vadd.f32 %v286, %v315
      %v326 = vadd.f32 %v287, %v315
      %v327 = vadd.f32 %v288, %v315
      %v328 = vadd.f32 %v289, %v315
      %v329 = vadd.f32 %v290, %v315
      %v330 = vadd.f32 %v291, %v315
      %v331 = vadd.f32 %v292, %v315
      %v332 = vadd.f32 %v293, %v315
      %v333 = vadd.f32 %v294, %v315
      %v334 = vadd.f32 %v295, %v315
      %v335 = vadd.f32 %v296, %v315
      %v336 = vadd.f32 %v297, %v315
      %v337 = vadd.f32 %v298, %v315
      %v338 = vadd.f32 %v299, %v315
      %v339 = vadd.f32 %v300, %v315
      %v340 = vadd.f32 %v301, %v315
      %v341 = vadd.f32 %v302, %v315
      %v342 = vadd.f32 %v303, %v315
      %v343 = vadd.f32 %v304, %v315
      %v344 = vadd.f32 %v305, %v315
      %v345 = vadd.f32 %v306, %v315
      %v346 = vadd.f32 %v307, %v315
      %v347 = vadd.f32 %v308, %v315
      %v348 = vadd.f32 %v309, %v315
      %v349 = vxor.u32 %v317, 2147483648
      %v350 = vxor.u32 %v318, 2147483648
      %v351 = vxor.u32 %v319, 2147483648
      %v352 = vxor.u32 %v320, 2147483648
      %v353 = vxor.u32 %v321, 2147483648
      %v354 = vxor.u32 %v322, 2147483648
      %v355 = vxor.u32 %v323, 2147483648
      %v356 = vxor.u32 %v324, 2147483648
      %v357 = vxor.u32 %v325, 2147483648
      %v358 = vxor.u32 %v326, 2147483648
      %v359 = vxor.u32 %v327, 2147483648
      %v360 = vxor.u32 %v328, 2147483648
      %v361 = vxor.u32 %v329, 2147483648
      %v362 = vxor.u32 %v330, 2147483648
      %v363 = vxor.u32 %v331, 2147483648
      %v364 = vxor.u32 %v332, 2147483648
      %v365 = vxor.u32 %v333, 2147483648
      %v366 = vxor.u32 %v334, 2147483648
      %v367 = vxor.u32 %v335, 2147483648
      %v368 = vxor.u32 %v336, 2147483648
      %v369 = vxor.u32 %v337, 2147483648
      %v370 = vxor.u32 %v338, 2147483648
      %v371 = vxor.u32 %v339, 2147483648
      %v372 = vxor.u32 %v340, 2147483648
      %v373 = vxor.u32 %v341, 2147483648
      %v374 = vxor.u32 %v342, 2147483648
      %v375 = vxor.u32 %v343, 2147483648
      %v376 = vxor.u32 %v344, 2147483648
      %v377 = vxor.u32 %v345, 2147483648
      %v378 = vxor.u32 %v346, 2147483648
      %v379 = vxor.u32 %v347, 2147483648
      %v380 = vxor.u32 %v348, 2147483648
      %v381 = vmul.f32 %v349, 1.442695
      %v382 = vpow.pop %v381
      %v383 = vmul.f32 %v350, 1.442695
      %v384 = vpow.pop %v383
      %v385 = vmul.f32 %v351, 1.442695
      %v386 = vpow.pop %v385
      %v387 = vmul.f32 %v352, 1.442695
      %v388 = vpow.pop %v387
      %v389 = vmul.f32 %v353, 1.442695
      %v390 = vpow.pop %v389
      %v391 = vmul.f32 %v354, 1.442695
      %v392 = vpow.pop %v391
      %v393 = vmul.f32 %v355, 1.442695
      %v394 = vpow.pop %v393
      %v395 = vmul.f32 %v356, 1.442695
      %v396 = vpow.pop %v395
      %v397 = vmul.f32 %v357, 1.442695
      %v398 = vpow.pop %v397
      %v399 = vmul.f32 %v358, 1.442695
      %v400 = vpow.pop %v399
      %v401 = vmul.f32 %v359, 1.442695
      %v402 = vpow.pop %v401
      %v403 = vmul.f32 %v360, 1.442695
      %v404 = vpow.pop %v403
      %v405 = vmul.f32 %v361, 1.442695
      %v406 = vpow.pop %v405
      %v407 = vmul.f32 %v362, 1.442695
      %v408 = vpow.pop %v407
      %v409 = vmul.f32 %v363, 1.442695
      %v410 = vpow.pop %v409
      %v411 = vmul.f32 %v364, 1.442695
      %v412 = vpow.pop %v411
      %v413 = vmul.f32 %v365, 1.442695
      %v414 = vpow.pop %v413
      %v415 = vmul.f32 %v366, 1.442695
      %v416 = vpow.pop %v415
      %v417 = vmul.f32 %v367, 1.442695
      %v418 = vpow.pop %v417
      %v419 = vmul.f32 %v368, 1.442695
      %v420 = vpow.pop %v419
      %v421 = vmul.f32 %v369, 1.442695
      %v422 = vpow.pop %v421
      %v423 = vmul.f32 %v370, 1.442695
      %v424 = vpow.pop %v423
      %v425 = vmul.f32 %v371, 1.442695
      %v426 = vpow.pop %v425
      %v427 = vmul.f32 %v372, 1.442695
      %v428 = vpow.pop %v427
      %v429 = vmul.f32 %v373, 1.442695
      %v430 = vpow.pop %v429
      %v431 = vmul.f32 %v374, 1.442695
      %v432 = vpow.pop %v431
      %v433 = vmul.f32 %v375, 1.442695
      %v434 = vpow.pop %v433
      %v435 = vmul.f32 %v376, 1.442695
      %v436 = vpow.pop %v435
      %v437 = vmul.f32 %v377, 1.442695
      %v438 = vpow.pop %v437
      %v439 = vmul.f32 %v378, 1.442695
      %v440 = vpow.pop %v439
      %v441 = vmul.f32 %v379, 1.442695
      %v442 = vpow.pop %v441
      %v443 = vmul.f32 %v380, 1.442695
      %v444 = vpow.pop %v443
      %v445 = vadd.f32 %v382, 1.0
      %v446 = vadd.f32 %v384, 1.0
      %v447 = vadd.f32 %v386, 1.0
      %v448 = vadd.f32 %v388, 1.0
      %v449 = vadd.f32 %v390, 1.0
      %v450 = vadd.f32 %v392, 1.0
      %v451 = vadd.f32 %v394, 1.0
      %v452 = vadd.f32 %v396, 1.0
      %v453 = vadd.f32 %v398, 1.0
      %v454 = vadd.f32 %v400, 1.0
      %v455 = vadd.f32 %v402, 1.0
      %v456 = vadd.f32 %v404, 1.0
      %v457 = vadd.f32 %v406, 1.0
      %v458 = vadd.f32 %v408, 1.0
      %v459 = vadd.f32 %v410, 1.0
      %v460 = vadd.f32 %v412, 1.0
      %v461 = vadd.f32 %v414, 1.0
      %v462 = vadd.f32 %v416, 1.0
      %v463 = vadd.f32 %v418, 1.0
      %v464 = vadd.f32 %v420, 1.0
      %v465 = vadd.f32 %v422, 1.0
      %v466 = vadd.f32 %v424, 1.0
      %v467 = vadd.f32 %v426, 1.0
      %v468 = vadd.f32 %v428, 1.0
      %v469 = vadd.f32 %v430, 1.0
      %v470 = vadd.f32 %v432, 1.0
      %v471 = vadd.f32 %v434, 1.0
      %v472 = vadd.f32 %v436, 1.0
      %v473 = vadd.f32 %v438, 1.0
      %v474 = vadd.f32 %v440, 1.0
      %v475 = vadd.f32 %v442, 1.0
      %v476 = vadd.f32 %v444, 1.0
      %v477 = vrcp.pop %v445
      %v478 = vmul.f32 1.0, %v477
      %v479 = vrcp.pop %v446
      %v480 = vmul.f32 1.0, %v479
      %v481 = vrcp.pop %v447
      %v482 = vmul.f32 1.0, %v481
      %v483 = vrcp.pop %v448
      %v484 = vmul.f32 1.0, %v483
      %v485 = vrcp.pop %v449
      %v486 = vmul.f32 1.0, %v485
      %v487 = vrcp.pop %v450
      %v488 = vmul.f32 1.0, %v487
      %v489 = vrcp.pop %v451
      %v490 = vmul.f32 1.0, %v489
      %v491 = vrcp.pop %v452
      %v492 = vmul.f32 1.0, %v491
      %v493 = vrcp.pop %v453
      %v494 = vmul.f32 1.0, %v493
      %v495 = vrcp.pop %v454
      %v496 = vmul.f32 1.0, %v495
      %v497 = vrcp.pop %v455
      %v498 = vmul.f32 1.0, %v497
      %v499 = vrcp.pop %v456
      %v500 = vmul.f32 1.0, %v499
      %v501 = vrcp.pop %v457
      %v502 = vmul.f32 1.0, %v501
      %v503 = vrcp.pop %v458
      %v504 = vmul.f32 1.0, %v503
      %v505 = vrcp.pop %v459
      %v506 = vmul.f32 1.0, %v505
      %v507 = vrcp.pop %v460
      %v508 = vmul.f32 1.0, %v507
      %v509 = vrcp.pop %v461
      %v510 = vmul.f32 1.0, %v509
      %v511 = vrcp.pop %v462
      %v512 = vmul.f32 1.0, %v511
      %v513 = vrcp.pop %v463
      %v514 = vmul.f32 1.0, %v513
      %v515 = vrcp.pop %v464
      %v516 = vmul.f32 1.0, %v515
      %v517 = vrcp.pop %v465
      %v518 = vmul.f32 1.0, %v517
      %v519 = vrcp.pop %v466
      %v520 = vmul.f32 1.0, %v519
      %v521 = vrcp.pop %v467
      %v522 = vmul.f32 1.0, %v521
      %v523 = vrcp.pop %v468
      %v524 = vmul.f32 1.0, %v523
      %v525 = vrcp.pop %v469
      %v526 = vmul.f32 1.0, %v525
      %v527 = vrcp.pop %v470
      %v528 = vmul.f32 1.0, %v527
      %v529 = vrcp.pop %v471
      %v530 = vmul.f32 1.0, %v529
      %v531 = vrcp.pop %v472
      %v532 = vmul.f32 1.0, %v531
      %v533 = vrcp.pop %v473
      %v534 = vmul.f32 1.0, %v533
      %v535 = vrcp.pop %v474
      %v536 = vmul.f32 1.0, %v535
      %v537 = vrcp.pop %v475
      %v538 = vmul.f32 1.0, %v537
      %v539 = vrcp.pop %v476
      %v540 = vmul.f32 1.0, %v539
      %v541 = vmul.f32 %v317, %v478
      %v542 = vmul.f32 %v318, %v480
      %v543 = vmul.f32 %v319, %v482
      %v544 = vmul.f32 %v320, %v484
      %v545 = vmul.f32 %v321, %v486
      %v546 = vmul.f32 %v322, %v488
      %v547 = vmul.f32 %v323, %v490
      %v548 = vmul.f32 %v324, %v492
      %v549 = vmul.f32 %v325, %v494
      %v550 = vmul.f32 %v326, %v496
      %v551 = vmul.f32 %v327, %v498
      %v552 = vmul.f32 %v328, %v500
      %v553 = vmul.f32 %v329, %v502
      %v554 = vmul.f32 %v330, %v504
      %v555 = vmul.f32 %v331, %v506
      %v556 = vmul.f32 %v332, %v508
      %v557 = vmul.f32 %v333, %v510
      %v558 = vmul.f32 %v334, %v512
      %v559 = vmul.f32 %v335, %v514
      %v560 = vmul.f32 %v336, %v516
      %v561 = vmul.f32 %v337, %v518
      %v562 = vmul.f32 %v338, %v520
      %v563 = vmul.f32 %v339, %v522
      %v564 = vmul.f32 %v340, %v524
      %v565 = vmul.f32 %v341, %v526
      %v566 = vmul.f32 %v342, %v528
      %v567 = vmul.f32 %v343, %v530
      %v568 = vmul.f32 %v344, %v532
      %v569 = vmul.f32 %v345, %v534
      %v570 = vmul.f32 %v346, %v536
      %v571 = vmul.f32 %v347, %v538
      %v572 = vmul.f32 %v348, %v540
      %v573 = vld [vmem:[%s3] sm:$0xff]
      %v574 = vld [vmem:[%s3 + $0x8] sm:$0xff]
      %vm575 = vcmask 130048
      %v577 = vsel %vm575, %v541, 0
      %v580 = vsel %vm575, %v542, 0
      %v583 = vsel %vm575, %v543, 0
      %v586 = vsel %vm575, %v544, 0
      %v589 = vsel %vm575, %v545, 0
      %v592 = vsel %vm575, %v546, 0
      %v595 = vsel %vm575, %v547, 0
      %v598 = vsel %vm575, %v548, 0
      %v601 = vsel %vm575, %v549, 0
      %v604 = vsel %vm575, %v550, 0
      %v607 = vsel %vm575, %v551, 0
      %v610 = vsel %vm575, %v552, 0
      %v613 = vsel %vm575, %v553, 0
      %v616 = vsel %vm575, %v554, 0
      %v619 = vsel %vm575, %v555, 0
      %v622 = vsel %vm575, %v556, 0
      %v625 = vsel %vm575, %v557, 0
      %v628 = vsel %vm575, %v558, 0
      %v631 = vsel %vm575, %v559, 0
      %v634 = vsel %vm575, %v560, 0
      %v637 = vsel %vm575, %v561, 0
      %v640 = vsel %vm575, %v562, 0
      %v643 = vsel %vm575, %v563, 0
      %v646 = vsel %vm575, %v564, 0
      %v649 = vsel %vm575, %v565, 0
      %v652 = vsel %vm575, %v566, 0
      %v655 = vsel %vm575, %v567, 0
      %v658 = vsel %vm575, %v568, 0
      %v661 = vsel %vm575, %v569, 0
      %v664 = vsel %vm575, %v570, 0
      %v667 = vsel %vm575, %v571, 0
      %v670 = vsel %vm575, %v572, 0
      %672 = vmatprep.subr.mxu0 0.0
      %673 = vmatpush1.msra.mxu0 %v573
      %674 = vmatprep.subr.mxu0 0.0
      %675 = vmatpush1.msra.mxu0 %v574
      %676 = vmatprep.subr.mxu0 0.0
      %677 = vmatpush1.msra.mxu0 0.0
      %678 = vmatprep.subr.mxu0 0.0
      %679 = vmatpush1.msra.mxu0 0.0
      %680 = vmatprep.subr.mxu0 0.0
      %681 = vmatpush1.msra.mxu0 0.0
      %682 = vmatprep.subr.mxu0 0.0
      %683 = vmatpush1.msra.mxu0 0.0
      %684 = vmatprep.subr.mxu0 0.0
      %685 = vmatpush1.msra.mxu0 0.0
      %686 = vmatprep.subr.mxu0 0.0
      %687 = vmatpush1.msra.mxu0 0.0
      %688 = vmatprep.subr.mxu0 0.0
      %689 = vmatpush1.msra.mxu0 0.0
      %690 = vmatprep.subr.mxu0 0.0
      %691 = vmatpush1.msra.mxu0 0.0
      %692 = vmatprep.subr.mxu0 0.0
      %693 = vmatpush1.msra.mxu0 0.0
      %694 = vmatprep.subr.mxu0 0.0
      %695 = vmatpush1.msra.mxu0 0.0
      %696 = vmatprep.subr.mxu0 0.0
      %697 = vmatpush1.msra.mxu0 0.0
      %698 = vmatprep.subr.mxu0 0.0
      %699 = vmatpush1.msra.mxu0 0.0
      %700 = vmatprep.subr.mxu0 0.0
      %701 = vmatpush1.msra.mxu0 0.0
      %702 = vmatprep.subr.mxu0 0.0
      %703 = vmatpush1.msra.mxu0 0.0
      %704 = vmatprep.subr.mxu0 0.0
      %705 = vmatpush1.msra.mxu0 0.0
      %706 = vmatprep.subr.mxu0 0.0
      %707 = vmatpush1.msra.mxu0 0.0
      %708 = vmatprep.subr.mxu0 0.0
      %709 = vmatpush1.msra.mxu0 0.0
      %710 = vmatprep.subr.mxu0 0.0
      %711 = vmatpush1.msra.mxu0 0.0
      %712 = vmatprep.subr.mxu0 0.0
      %713 = vmatpush1.msra.mxu0 0.0
      %714 = vmatprep.subr.mxu0 0.0
      %715 = vmatpush1.msra.mxu0 0.0
      %716 = vmatprep.subr.mxu0 0.0
      %717 = vmatpush1.msra.mxu0 0.0
      %718 = vmatprep.subr.mxu0 0.0
      %719 = vmatpush1.msra.mxu0 0.0
      %720 = vmatprep.subr.mxu0 0.0
      %721 = vmatpush1.msra.mxu0 0.0
      %722 = vmatprep.subr.mxu0 0.0
      %723 = vmatpush1.msra.mxu0 0.0
      %724 = vmatprep.subr.mxu0 0.0
      %725 = vmatpush1.msra.mxu0 0.0
      %726 = vmatprep.subr.mxu0 0.0
      %727 = vmatpush1.msra.mxu0 0.0
      %728 = vmatprep.subr.mxu0 0.0
      %729 = vmatpush1.msra.mxu0 0.0
      %730 = vmatprep.subr.mxu0 0.0
      %731 = vmatpush1.msra.mxu0 0.0
      %732 = vmatprep.subr.mxu0 0.0
      %733 = vmatpush1.msra.mxu0 0.0
      %734 = vmatprep.subr.mxu0 0.0
      %735 = vmatpush1.msra.mxu0 0.0
      %736 = vmatprep.mubr.f32.mxu0 0.0
      %737 = vmatmul.mubr.f32.gmra.mrb[0].mxu0 %v577
      %v738 = vpop.f32.mrb[0].mxu0
      %v739 = vadd.f32 0.0, %v738
      %v740 = vpop.f32.mrb[0].mxu0
      %741 = vmatprep.mubr.f32.mxu0 0.0
      %742 = vmatmul.mubr.f32.gmra.mrb[0].mxu0 %v580
      %v743 = vpop.f32.mrb[0].mxu0
      %v744 = vadd.f32 0.0, %v743
      %v745 = vpop.f32.mrb[0].mxu0
      %746 = vmatprep.mubr.f32.mxu0 0.0
      %747 = vmatmul.mubr.f32.gmra.mrb[0].mxu0 %v583
      %v748 = vpop.f32.mrb[0].mxu0
      %v749 = vadd.f32 0.0, %v748
      %v750 = vpop.f32.mrb[0].mxu0
      %751 = vmatprep.mubr.f32.mxu0 0.0
      %752 = vmatmul.mubr.f32.gmra.mrb[0].mxu0 %v586
      %v753 = vpop.f32.mrb[0].mxu0
      %v754 = vadd.f32 0.0, %v753
      %v755 = vpop.f32.mrb[0].mxu0
      %756 = vmatprep.mubr.f32.mxu0 0.0
      %757 = vmatmul.mubr.f32.gmra.mrb[0].mxu0 %v589
      %v758 = vpop.f32.mrb[0].mxu0
      %v759 = vadd.f32 0.0, %v758
      %v760 = vpop.f32.mrb[0].mxu0
      %761 = vmatprep.mubr.f32.mxu0 0.0
      %762 = vmatmul.mubr.f32.gmra.mrb[0].mxu0 %v592
      %v763 = vpop.f32.mrb[0].mxu0
      %v764 = vadd.f32 0.0, %v763
      %v765 = vpop.f32.mrb[0].mxu0
      %766 = vmatprep.mubr.f32.mxu0 0.0
      %767 = vmatmul.mubr.f32.gmra.mrb[0].mxu0 %v595
      %v768 = vpop.f32.mrb[0].mxu0
      %v769 = vadd.f32 0.0, %v768
      %v770 = vpop.f32.mrb[0].mxu0
      %771 = vmatprep.mubr.f32.mxu0 0.0
      %772 = vmatmul.mubr.f32.gmra.mrb[0].mxu0 %v598
      %v773 = vpop.f32.mrb[0].mxu0
      %v774 = vadd.f32 0.0, %v773
      %v775 = vpop.f32.mrb[0].mxu0
      %776 = vmatprep.mubr.f32.mxu0 0.0
      %777 = vmatmul.mubr.f32.gmra.mrb[0].mxu0 %v601
      %v778 = vpop.f32.mrb[0].mxu0
      %v779 = vadd.f32 0.0, %v778
      %v780 = vpop.f32.mrb[0].mxu0
      %781 = vmatprep.mubr.f32.mxu0 0.0
      %782 = vmatmul.mubr.f32.gmra.mrb[0].mxu0 %v604
      %v783 = vpop.f32.mrb[0].mxu0
      %v784 = vadd.f32 0.0, %v783
      %v785 = vpop.f32.mrb[0].mxu0
      %786 = vmatprep.mubr.f32.mxu0 0.0
      %787 = vmatmul.mubr.f32.gmra.mrb[0].mxu0 %v607
      %v788 = vpop.f32.mrb[0].mxu0
      %v789 = vadd.f32 0.0, %v788
      %v790 = vpop.f32.mrb[0].mxu0
      %791 = vmatprep.mubr.f32.mxu0 0.0
      %792 = vmatmul.mubr.f32.gmra.mrb[0].mxu0 %v610
      %v793 = vpop.f32.mrb[0].mxu0
      %v794 = vadd.f32 0.0, %v793
      %v795 = vpop.f32.mrb[0].mxu0
      %796 = vmatprep.mubr.f32.mxu0 0.0
      %797 = vmatmul.mubr.f32.gmra.mrb[0].mxu0 %v613
      %v798 = vpop.f32.mrb[0].mxu0
      %v799 = vadd.f32 0.0, %v798
      %v800 = vpop.f32.mrb[0].mxu0
      %801 = vmatprep.mubr.f32.mxu0 0.0
      %802 = vmatmul.mubr.f32.gmra.mrb[0].mxu0 %v616
      %v803 = vpop.f32.mrb[0].mxu0
      %v804 = vadd.f32 0.0, %v803
      %v805 = vpop.f32.mrb[0].mxu0
      %806 = vmatprep.mubr.f32.mxu0 0.0
      %807 = vmatmul.mubr.f32.gmra.mrb[0].mxu0 %v619
      %v808 = vpop.f32.mrb[0].mxu0
      %v809 = vadd.f32 0.0, %v808
      %v810 = vpop.f32.mrb[0].mxu0
      %811 = vmatprep.mubr.f32.mxu0 0.0
      %812 = vmatmul.mubr.f32.gmra.mrb[0].mxu0 %v622
      %v813 = vpop.f32.mrb[0].mxu0
      %v814 = vadd.f32 0.0, %v813
      %v815 = vpop.f32.mrb[0].mxu0
      %816 = vmatprep.mubr.f32.mxu0 0.0
      %817 = vmatmul.mubr.f32.gmra.mrb[0].mxu0 %v625
      %v818 = vpop.f32.mrb[0].mxu0
      %v819 = vadd.f32 0.0, %v818
      %v820 = vpop.f32.mrb[0].mxu0
      %821 = vmatprep.mubr.f32.mxu0 0.0
      %822 = vmatmul.mubr.f32.gmra.mrb[0].mxu0 %v628
      %v823 = vpop.f32.mrb[0].mxu0
      %v824 = vadd.f32 0.0, %v823
      %v825 = vpop.f32.mrb[0].mxu0
      %826 = vmatprep.mubr.f32.mxu0 0.0
      %827 = vmatmul.mubr.f32.gmra.mrb[0].mxu0 %v631
      %v828 = vpop.f32.mrb[0].mxu0
      %v829 = vadd.f32 0.0, %v828
      %v830 = vpop.f32.mrb[0].mxu0
      %831 = vmatprep.mubr.f32.mxu0 0.0
      %832 = vmatmul.mubr.f32.gmra.mrb[0].mxu0 %v634
      %v833 = vpop.f32.mrb[0].mxu0
      %v834 = vadd.f32 0.0, %v833
      %v835 = vpop.f32.mrb[0].mxu0
      %836 = vmatprep.mubr.f32.mxu0 0.0
      %837 = vmatmul.mubr.f32.gmra.mrb[0].mxu0 %v637
      %v838 = vpop.f32.mrb[0].mxu0
      %v839 = vadd.f32 0.0, %v838
      %v840 = vpop.f32.mrb[0].mxu0
      %841 = vmatprep.mubr.f32.mxu0 0.0
      %842 = vmatmul.mubr.f32.gmra.mrb[0].mxu0 %v640
      %v843 = vpop.f32.mrb[0].mxu0
      %v844 = vadd.f32 0.0, %v843
      %v845 = vpop.f32.mrb[0].mxu0
      %846 = vmatprep.mubr.f32.mxu0 0.0
      %847 = vmatmul.mubr.f32.gmra.mrb[0].mxu0 %v643
      %v848 = vpop.f32.mrb[0].mxu0
      %v849 = vadd.f32 0.0, %v848
      %v850 = vpop.f32.mrb[0].mxu0
      %851 = vmatprep.mubr.f32.mxu0 0.0
      %852 = vmatmul.mubr.f32.gmra.mrb[0].mxu0 %v646
      %v853 = vpop.f32.mrb[0].mxu0
      %v854 = vadd.f32 0.0, %v853
      %v855 = vpop.f32.mrb[0].mxu0
      %856 = vmatprep.mubr.f32.mxu0 0.0
      %857 = vmatmul.mubr.f32.gmra.mrb[0].mxu0 %v649
      %v858 = vpop.f32.mrb[0].mxu0
      %v859 = vadd.f32 0.0, %v858
      %v860 = vpop.f32.mrb[0].mxu0
      %861 = vmatprep.mubr.f32.mxu0 0.0
      %862 = vmatmul.mubr.f32.gmra.mrb[0].mxu0 %v652
      %v863 = vpop.f32.mrb[0].mxu0
      %v864 = vadd.f32 0.0, %v863
      %v865 = vpop.f32.mrb[0].mxu0
      %866 = vmatprep.mubr.f32.mxu0 0.0
      %867 = vmatmul.mubr.f32.gmra.mrb[0].mxu0 %v655
      %v868 = vpop.f32.mrb[0].mxu0
      %v869 = vadd.f32 0.0, %v868
      %v870 = vpop.f32.mrb[0].mxu0
      %871 = vmatprep.mubr.f32.mxu0 0.0
      %872 = vmatmul.mubr.f32.gmra.mrb[0].mxu0 %v658
      %v873 = vpop.f32.mrb[0].mxu0
      %v874 = vadd.f32 0.0, %v873
      %v875 = vpop.f32.mrb[0].mxu0
      %876 = vmatprep.mubr.f32.mxu0 0.0
      %877 = vmatmul.mubr.f32.gmra.mrb[0].mxu0 %v661
      %v878 = vpop.f32.mrb[0].mxu0
      %v879 = vadd.f32 0.0, %v878
      %v880 = vpop.f32.mrb[0].mxu0
      %881 = vmatprep.mubr.f32.mxu0 0.0
      %882 = vmatmul.mubr.f32.gmra.mrb[0].mxu0 %v664
      %v883 = vpop.f32.mrb[0].mxu0
      %v884 = vadd.f32 0.0, %v883
      %v885 = vpop.f32.mrb[0].mxu0
      %886 = vmatprep.mubr.f32.mxu0 0.0
      %887 = vmatmul.mubr.f32.gmra.mrb[0].mxu0 %v667
      %v888 = vpop.f32.mrb[0].mxu0
      %v889 = vadd.f32 0.0, %v888
      %v890 = vpop.f32.mrb[0].mxu0
      %891 = vmatprep.mubr.f32.mxu0 0.0
      %892 = vmatmul.mubr.f32.gmra.mrb[0].mxu0 %v670
      %v893 = vpop.f32.mrb[0].mxu0
      %v894 = vadd.f32 0.0, %v893
      %v895 = vpop.f32.mrb[0].mxu0
      %896 = vdwg.mxu0
      %vm897 = vcmask 31744
      %898 = vst.msk [vmem:[%s233] sm:$0xff] %vm897, %v739
      %899 = vst.msk [vmem:[%s233 + $0x8] sm:$0xff] %vm897, %v744
      %900 = vst.msk [vmem:[%s233 + $0x10] sm:$0xff] %vm897, %v749
      %901 = vst.msk [vmem:[%s233 + $0x18] sm:$0xff] %vm897, %v754
      %902 = vst.msk [vmem:[%s233 + $0x20] sm:$0xff] %vm897, %v759
      %903 = vst.msk [vmem:[%s233 + $0x28] sm:$0xff] %vm897, %v764
      %904 = vst.msk [vmem:[%s233 + $0x30] sm:$0xff] %vm897, %v769
      %905 = vst.msk [vmem:[%s233 + $0x38] sm:$0xff] %vm897, %v774
      %906 = vst.msk [vmem:[%s233 + $0x40] sm:$0xff] %vm897, %v779
      %907 = vst.msk [vmem:[%s233 + $0x48] sm:$0xff] %vm897, %v784
      %908 = vst.msk [vmem:[%s233 + $0x50] sm:$0xff] %vm897, %v789
      %909 = vst.msk [vmem:[%s233 + $0x58] sm:$0xff] %vm897, %v794
      %910 = vst.msk [vmem:[%s233 + $0x60] sm:$0xff] %vm897, %v799
      %911 = vst.msk [vmem:[%s233 + $0x68] sm:$0xff] %vm897, %v804
      %912 = vst.msk [vmem:[%s233 + $0x70] sm:$0xff] %vm897, %v809
      %913 = vst.msk [vmem:[%s233 + $0x78] sm:$0xff] %vm897, %v814
      %914 = vst.msk [vmem:[%s233 + $0x80] sm:$0xff] %vm897, %v819
      %915 = vst.msk [vmem:[%s233 + $0x88] sm:$0xff] %vm897, %v824
      %916 = vst.msk [vmem:[%s233 + $0x90] sm:$0xff] %vm897, %v829
      %917 = vst.msk [vmem:[%s233 + $0x98] sm:$0xff] %vm897, %v834
      %918 = vst.msk [vmem:[%s233 + $0xa0] sm:$0xff] %vm897, %v839
      %919 = vst.msk [vmem:[%s233 + $0xa8] sm:$0xff] %vm897, %v844
      %920 = vst.msk [vmem:[%s233 + $0xb0] sm:$0xff] %vm897, %v849
      %921 = vst.msk [vmem:[%s233 + $0xb8] sm:$0xff] %vm897, %v854
      %922 = vst.msk [vmem:[%s233 + $0xc0] sm:$0xff] %vm897, %v859
      %923 = vst.msk [vmem:[%s233 + $0xc8] sm:$0xff] %vm897, %v864
      %924 = vst.msk [vmem:[%s233 + $0xd0] sm:$0xff] %vm897, %v869
      %925 = vst.msk [vmem:[%s233 + $0xd8] sm:$0xff] %vm897, %v874
      %926 = vst.msk [vmem:[%s233 + $0xe0] sm:$0xff] %vm897, %v879
      %927 = vst.msk [vmem:[%s233 + $0xe8] sm:$0xff] %vm897, %v884
      %928 = vst.msk [vmem:[%s233 + $0xf0] sm:$0xff] %vm897, %v889
      %929 = vst.msk [vmem:[%s233 + $0xf8] sm:$0xff] %vm897, %v894
      %v930 = vsel %vm897, %v739, 0.0
      %v931 = vsel %vm897, %v744, 0.0
      %v932 = vadd.f32 %v930, %v931
      %v933 = vsel %vm897, %v749, 0.0
      %v934 = vadd.f32 %v932, %v933
      %v935 = vsel %vm897, %v754, 0.0
      %v936 = vadd.f32 %v934, %v935
      %v937 = vsel %vm897, %v759, 0.0
      %v938 = vadd.f32 %v936, %v937
      %v939 = vsel %vm897, %v764, 0.0
      %v940 = vadd.f32 %v938, %v939
      %v941 = vsel %vm897, %v769, 0.0
      %v942 = vadd.f32 %v940, %v941
      %v943 = vsel %vm897, %v774, 0.0
      %v944 = vadd.f32 %v942, %v943
      %v945 = vsel %vm897, %v779, 0.0
      %v946 = vadd.f32 %v944, %v945
      %v947 = vsel %vm897, %v784, 0.0
      %v948 = vadd.f32 %v946, %v947
      %v949 = vsel %vm897, %v789, 0.0
      %v950 = vadd.f32 %v948, %v949
      %v951 = vsel %vm897, %v794, 0.0
      %v952 = vadd.f32 %v950, %v951
      %v953 = vsel %vm897, %v799, 0.0
      %v954 = vadd.f32 %v952, %v953
      %v955 = vsel %vm897, %v804, 0.0
      %v956 = vadd.f32 %v954, %v955
      %v957 = vsel %vm897, %v809, 0.0
      %v958 = vadd.f32 %v956, %v957
      %v959 = vsel %vm897, %v814, 0.0
      %v960 = vadd.f32 %v958, %v959
      %v961 = vsel %vm897, %v819, 0.0
      %v962 = vadd.f32 %v960, %v961
      %v963 = vsel %vm897, %v824, 0.0
      %v964 = vadd.f32 %v962, %v963
      %v965 = vsel %vm897, %v829, 0.0
      %v966 = vadd.f32 %v964, %v965
      %v967 = vsel %vm897, %v834, 0.0
      %v968 = vadd.f32 %v966, %v967
      %v969 = vsel %vm897, %v839, 0.0
      %v970 = vadd.f32 %v968, %v969
      %v971 = vsel %vm897, %v844, 0.0
      %v972 = vadd.f32 %v970, %v971
      %v973 = vsel %vm897, %v849, 0.0
      %v974 = vadd.f32 %v972, %v973
      %v975 = vsel %vm897, %v854, 0.0
      %v976 = vadd.f32 %v974, %v975
      %v977 = vsel %vm897, %v859, 0.0
      %v978 = vadd.f32 %v976, %v977
      %v979 = vsel %vm897, %v864, 0.0
      %v980 = vadd.f32 %v978, %v979
      %v981 = vsel %vm897, %v869, 0.0
      %v982 = vadd.f32 %v980, %v981
      %v983 = vsel %vm897, %v874, 0.0
      %v984 = vadd.f32 %v982, %v983
      %v985 = vsel %vm897, %v879, 0.0
      %v986 = vadd.f32 %v984, %v985
      %v987 = vsel %vm897, %v884, 0.0
      %v988 = vadd.f32 %v986, %v987
      %v989 = vsel %vm897, %v889, 0.0
      %v990 = vadd.f32 %v988, %v989
      %v991 = vsel %vm897, %v894, 0.0
      %v992 = vadd.f32 %v990, %v991
      %v993 = vrot.slane %v992, 4
      %v994 = vadd.f32 %v992, %v993
      %v995 = vrot.slane %v994, 2
      %v996 = vadd.f32 %v994, %v995
      %v997 = vrot.slane %v996, 1
      %v998 = vadd.f32 %v996, %v997
      %v999 = vmul.f32 %v739, %v739
      %v1000 = vmul.f32 %v744, %v744
      %v1001 = vmul.f32 %v749, %v749
      %v1002 = vmul.f32 %v754, %v754
      %v1003 = vmul.f32 %v759, %v759
      %v1004 = vmul.f32 %v764, %v764
      %v1005 = vmul.f32 %v769, %v769
      %v1006 = vmul.f32 %v774, %v774
      %v1007 = vmul.f32 %v779, %v779
      %v1008 = vmul.f32 %v784, %v784
      %v1009 = vmul.f32 %v789, %v789
      %v1010 = vmul.f32 %v794, %v794
      %v1011 = vmul.f32 %v799, %v799
      %v1012 = vmul.f32 %v804, %v804
      %v1013 = vmul.f32 %v809, %v809
      %v1014 = vmul.f32 %v814, %v814
      %v1015 = vmul.f32 %v819, %v819
      %v1016 = vmul.f32 %v824, %v824
      %v1017 = vmul.f32 %v829, %v829
      %v1018 = vmul.f32 %v834, %v834
      %v1019 = vmul.f32 %v839, %v839
      %v1020 = vmul.f32 %v844, %v844
      %v1021 = vmul.f32 %v849, %v849
      %v1022 = vmul.f32 %v854, %v854
      %v1023 = vmul.f32 %v859, %v859
      %v1024 = vmul.f32 %v864, %v864
      %v1025 = vmul.f32 %v869, %v869
      %v1026 = vmul.f32 %v874, %v874
      %v1027 = vmul.f32 %v879, %v879
      %v1028 = vmul.f32 %v884, %v884
      %v1029 = vmul.f32 %v889, %v889
      %v1030 = vmul.f32 %v894, %v894
      %v1031 = vsel %vm897, %v999, 0.0
      %v1032 = vsel %vm897, %v1000, 0.0
      %v1033 = vadd.f32 %v1031, %v1032
      %v1034 = vsel %vm897, %v1001, 0.0
      %v1035 = vadd.f32 %v1033, %v1034
      %v1036 = vsel %vm897, %v1002, 0.0
      %v1037 = vadd.f32 %v1035, %v1036
      %v1038 = vsel %vm897, %v1003, 0.0
      %v1039 = vadd.f32 %v1037, %v1038
      %v1040 = vsel %vm897, %v1004, 0.0
      %v1041 = vadd.f32 %v1039, %v1040
      %v1042 = vsel %vm897, %v1005, 0.0
      %v1043 = vadd.f32 %v1041, %v1042
      %v1044 = vsel %vm897, %v1006, 0.0
      %v1045 = vadd.f32 %v1043, %v1044
      %v1046 = vsel %vm897, %v1007, 0.0
      %v1047 = vadd.f32 %v1045, %v1046
      %v1048 = vsel %vm897, %v1008, 0.0
      %v1049 = vadd.f32 %v1047, %v1048
      %v1050 = vsel %vm897, %v1009, 0.0
      %v1051 = vadd.f32 %v1049, %v1050
      %v1052 = vsel %vm897, %v1010, 0.0
      %v1053 = vadd.f32 %v1051, %v1052
      %v1054 = vsel %vm897, %v1011, 0.0
      %v1055 = vadd.f32 %v1053, %v1054
      %v1056 = vsel %vm897, %v1012, 0.0
      %v1057 = vadd.f32 %v1055, %v1056
      %v1058 = vsel %vm897, %v1013, 0.0
      %v1059 = vadd.f32 %v1057, %v1058
      %v1060 = vsel %vm897, %v1014, 0.0
      %v1061 = vadd.f32 %v1059, %v1060
      %v1062 = vsel %vm897, %v1015, 0.0
      %v1063 = vadd.f32 %v1061, %v1062
      %v1064 = vsel %vm897, %v1016, 0.0
      %v1065 = vadd.f32 %v1063, %v1064
      %v1066 = vsel %vm897, %v1017, 0.0
      %v1067 = vadd.f32 %v1065, %v1066
      %v1068 = vsel %vm897, %v1018, 0.0
      %v1069 = vadd.f32 %v1067, %v1068
      %v1070 = vsel %vm897, %v1019, 0.0
      %v1071 = vadd.f32 %v1069, %v1070
      %v1072 = vsel %vm897, %v1020, 0.0
      %v1073 = vadd.f32 %v1071, %v1072
      %v1074 = vsel %vm897, %v1021, 0.0
      %v1075 = vadd.f32 %v1073, %v1074
      %v1076 = vsel %vm897, %v1022, 0.0
      %v1077 = vadd.f32 %v1075, %v1076
      %v1078 = vsel %vm897, %v1023, 0.0
      %v1079 = vadd.f32 %v1077, %v1078
      %v1080 = vsel %vm897, %v1024, 0.0
      %v1081 = vadd.f32 %v1079, %v1080
      %v1082 = vsel %vm897, %v1025, 0.0
      %v1083 = vadd.f32 %v1081, %v1082
      %v1084 = vsel %vm897, %v1026, 0.0
      %v1085 = vadd.f32 %v1083, %v1084
      %v1086 = vsel %vm897, %v1027, 0.0
      %v1087 = vadd.f32 %v1085, %v1086
      %v1088 = vsel %vm897, %v1028, 0.0
      %v1089 = vadd.f32 %v1087, %v1088
      %v1090 = vsel %vm897, %v1029, 0.0
      %v1091 = vadd.f32 %v1089, %v1090
      %v1092 = vsel %vm897, %v1030, 0.0
      %v1093 = vadd.f32 %v1091, %v1092
      %v1094 = vrot.slane %v1093, 4
      %v1095 = vadd.f32 %v1093, %v1094
      %v1096 = vrot.slane %v1095, 2
      %v1097 = vadd.f32 %v1095, %v1096
      %v1098 = vrot.slane %v1097, 1
      %v1099 = vadd.f32 %v1097, %v1098
      %vm1100 = vcmask 1040384
      %v1101 = vsel %vm1100, %v998, %v1099
      %vm1102 = vcmask 1041408
      %v1103 = vsel %vm1102, %v1101, 0.0
      %1104 = vst.msk [vmem:[%s238] sm:$0xff] %vm897, %v1103
      %s1105 = smul.u32 32, %s17
      %p1106 = scmp.lt.s32.totalorder %s1105, 63
      %s1107 = scalar_select %p1106, %s1105, 63
      %s1108 = smul.addr %s1107, 8
      %s1109 = scalar_lea.vmem %s4, %s1108
      %p1110 = scmp.lt.s32.totalorder %s17, 1
      %s1111 = scalar_select %p1110, %s17, 1
      %s1112 = smul.addr %s1111, 8
      %s1113 = scalar_lea.vmem %s5, %s1112
      // Predicated region
      $region37: #{edge_residual_forward.4} parent=35 // pred_check
        %p1114 = pneg %p124
      $region38: #{edge_residual_forward.4} parent=35 // pred_check_branch
        %1116 = sbr.rel (%p1114) target = $region40
      $region39: #{edge_residual_forward.4} parent=35 // pred_region
        %s1117 = smul.u32 32, %s17
      $region40: #{edge_residual_forward.4} parent=35 // pred_fallthru
        _
      // Predicated region
      $region41: #{edge_residual_forward.4} parent=35 // pred_check
        %p1118 = pneg %p150
      $region42: #{edge_residual_forward.4} parent=35 // pred_check_branch
        %1120 = sbr.rel (%p1118) target = $region44
      $region43: #{edge_residual_forward.4} parent=35 // pred_region
        _
      $region44: #{edge_residual_forward.4} parent=35 // pred_fallthru
        _
    $region36: #{edge_residual_forward.4} parent=5 // pred_fallthru
      _
    %p1121 = scmp.le.s32.totalorder 2, %s12
    // Predicated region
    $region45: #{edge_residual_forward.4} parent=5 // pred_check
      %p1122 = pneg %p1121
    $region46: #{edge_residual_forward.4} parent=5 // pred_check_branch
      %1124 = sbr.rel (%p1122) target = $region48
    $region47: #{edge_residual_forward.4} parent=5 // pred_region
      %s1125 = ssub.s32 %s12, 2
      // Predicated region
      $region49: #{edge_residual_forward.4} parent=47 // pred_check
        %p1126 = pneg %p130
      $region50: #{edge_residual_forward.4} parent=47 // pred_check_branch
        %1128 = sbr.rel (%p1126) target = $region52
      $region51: #{edge_residual_forward.4} parent=47 // pred_region
        %s1129 = smul.u32 32, %s18
        %p1130 = scmp.lt.s32.totalorder %s1129, 63
        %s1131 = scalar_select %p1130, %s1129, 63
        %s1132 = smul.addr %s1131, 8
        %s1133 = scalar_lea.vmem %s4, %s1132
      $region52: #{edge_residual_forward.4} parent=47 // pred_fallthru
        _
      // Predicated region
      $region53: #{edge_residual_forward.4} parent=47 // pred_check
        %p1134 = pneg %p156
      $region54: #{edge_residual_forward.4} parent=47 // pred_check_branch
        %1136 = sbr.rel (%p1134) target = $region56
      $region55: #{edge_residual_forward.4} parent=47 // pred_region
        %p1137 = scmp.lt.s32.totalorder %s18, 1
        %s1138 = scalar_select %p1137, %s18, 1
        %s1139 = smul.addr %s1138, 8
        %s1140 = scalar_lea.vmem %s5, %s1139
      $region56: #{edge_residual_forward.4} parent=47 // pred_fallthru
        _
    $region48: #{edge_residual_forward.4} parent=5 // pred_fallthru
      _
  $region6: #{edge_residual_forward.4} parent=0 // loop_footer
    %s16 = sadd.s32 1, %s12
  $region7: #{edge_residual_forward.4} parent=0 // loop_footer_branch
    %11 = sbr.rel target = $region3
  $region8: #{edge_residual_forward.4} parent=0 // loop_exit
    _

</llo_original>
